<compile_context>
chip_gen: v6e
topology: v6e:2x2x1
jax: 0.10.0
libtpu: 0.0.40
codegen_flags: <defaults>
</compile_context>

<pallas_src>
import jax
import jax.numpy as jnp
from jax import lax
from jax.experimental import pallas as pl
from jax.experimental.pallas import tpu as pltpu

# ----- LIFNeuronGroup.__init__ defaults --------------------------------------
V_TH_INIT = 1.0
V_RESET = 0.0
TAU = 20.0
DT = 1.0
DT_OVER_TAU = DT / TAU
MIN_THRESHOLD = 0.5
MAX_THRESHOLD = 2.0
ADAPTATION_DECAY = 0.9
SPIKE_INCREASE = 0.5
DEPRESSION_RATE = 0.1
RECOVERY_RATE = 0.05
USE_ADAPTIVE_THRESHOLD = True


# ----------------------------- kernel ----------------------------------------
def _lif_seq_kernel(i_ref, mod_ref, v0_ref, vth0_ref, adapt0_ref, syn0_ref,
                    spk_ref, v_ref, vth_ref, adapt_ref, syn_ref):
    tc = pl.program_id(2)
    f32 = jnp.float32

    # Load the initial state into the resident output tiles once per
    # (batch-tile, neuron-tile) block.
    @pl.when(tc == 0)
    def _():
        v_ref[...] = v0_ref[...].astype(f32)
        adapt_ref[...] = adapt0_ref[...].astype(f32)
        syn_ref[...] = syn0_ref[...].astype(f32)
        vth_ref[...] = vth0_ref[...].astype(f32)   # raw; clamped value stored below

    # The reference clamps V_th *after* each step and never otherwise updates
    # it: the very first step of the sequence sees the raw value, every later
    # step sees the (idempotently) clamped one.  So clamp once per chunk
    # (2 VPU ops / element / chunk) instead of a per-step clamp + store.
    v_th_raw = vth_ref[...]
    v_th_cl = (jnp.clip(v_th_raw, MIN_THRESHOLD, MAX_THRESHOLD)
               if USE_ADAPTIVE_THRESHOLD else v_th_raw)

    n_steps = i_ref.shape[0]   # Tc (static)

    def step(t, carry):
        V, adapt, syn, v_th = carry
        I = i_ref[t].astype(f32)
        # neuromodulator = sigmoid(external_modulation) (default transform)
        neuromod = jax.nn.sigmoid(mod_ref[t].astype(f32))
        I_eff = I * syn + neuromod - adapt
        V = V + (I_eff - V) * DT_OVER_TAU               # deterministic: noise == 0
        # Heaviside surrogate forward: spike where (V - V_th) > 0.
        # TODO(synk): tie-at-zero convention of SpikeFunction not specified.
        spiked = (V - v_th) > 0.0
        spike_f = spiked.astype(f32)
        V = jnp.where(spiked, V_RESET, V)
        adapt = adapt * ADAPTATION_DECAY + SPIKE_INCREASE * spike_f
        syn = syn * (1.0 - DEPRESSION_RATE * spike_f) + RECOVERY_RATE * (1.0 - syn)
        spk_ref[t] = spiked.astype(jnp.int8)
        return V, adapt, syn, v_th_cl

    V, adapt, syn, _ = lax.fori_loop(
        0, n_steps, step,
        (v_ref[...], adapt_ref[...], syn_ref[...], v_th_raw),
        unroll=True)

    v_ref[...] = V
    adapt_ref[...] = adapt
    syn_ref[...] = syn

    @pl.when(tc == 0)
    def _():
        vth_ref[...] = v_th_cl   # final V_th; constant for every later chunk


# ----------------------------- wrapper ---------------------------------------
def _pick_tile(dim, unit, pref):
    """Largest tile <= pref that is a multiple of `unit` and divides `dim`
    (the full dim itself is always a legal block)."""
    if dim <= pref or dim % unit != 0:
        return dim
    t = max(unit, (pref // unit) * unit)
    while dim % t != 0:
        t -= unit
    return t


def _largest_divisor_leq(n, cap):
    cap = int(max(1, min(cap, n)))
    for d in range(cap, 0, -1):
        if n % d == 0:
            return d
    return 1


def _tpu_vmem_capacity_bytes():
    try:
        info = pltpu.get_tpu_info()
        cap = getattr(info, "vmem_capacity_bytes", None)
        if cap:
            return int(cap)
    except Exception:
        pass
    return 64 * 1024 * 1024     # conservative (v7x-sized) fallback


_VMEM_CAPACITY = _tpu_vmem_capacity_bytes()
_BIG_VMEM = _VMEM_CAPACITY > 96 * 1024 * 1024   # v5e/v6e: 128 MiB, v7x: 64 MiB


def _resident_spec(shape, index_map):
    """Grid-invariant (resident) state block; single-buffered to save VMEM."""
    try:
        return pl.BlockSpec(shape, index_map, pipeline_mode=pl.Buffered(1))
    except Exception:   # older jax without pipeline_mode / Buffered
        return pl.BlockSpec(shape, index_map)


@jax.jit
def _lif_forward_sequence_impl(I_seq, mod_seq, V, V_th, adaptation_current,
                               synaptic_efficiency):
    T, B, N = I_seq.shape
    f32 = jnp.float32

    # Pad batch / neuron dims to legal tile multiples (trace-time decision,
    # avoids the huge-fallback-block failure mode for ragged shapes).
    pb = (-B) % 8
    pn = (-N) % 128
    if pb or pn:
        pad3 = ((0, 0), (0, pb), (0, pn))
        pad2 = ((0, pb), (0, pn))
        I_seq = jnp.pad(I_seq, pad3)
        mod_seq = jnp.pad(mod_seq, pad3)
        V = jnp.pad(V, pad2)
        V_th = jnp.pad(V_th, pad2, constant_values=V_TH_INIT)
        adaptation_current = jnp.pad(adaptation_current, pad2)
        synaptic_efficiency = jnp.pad(synaptic_efficiency, pad2,
                                      constant_values=1.0)
    Bp, Np = B + pb, N + pn

    # ---- generation-aware tiling --------------------------------------------
    # int8 spikes like (32,128)-aligned batch tiles; fall back to 8 otherwise.
    if Bp % 32 == 0:
        tb = _pick_tile(Bp, 32, 256 if _BIG_VMEM else 128)
    else:
        tb = _pick_tile(Bp, 8, 128)
    tn = _pick_tile(Np, 128, 2048 if _BIG_VMEM else 1024)
    gb, gn = Bp // tb, Np // tn

    # Guarantee >= 2 parallel grid blocks so both v7x TensorCores get work.
    if gb * gn < 2:
        if tn % 256 == 0:
            tn //= 2
        elif tb % 16 == 0:
            tb //= 2
        gb, gn = Bp // tb, Np // tn

    # Time chunk Tc: amortize the per-grid-step overhead while keeping the
    # double-buffered stream slabs + state tiles within a VMEM budget.
    in_bytes = I_seq.dtype.itemsize + mod_seq.dtype.itemsize
    per_step = tb * tn * (in_bytes + 1) * 2          # 2x-buffered I/mod/spike
    state_bytes = 8 * tb * tn * 4 * 2                # state in+out (upper bound)
    budget = (64 if _BIG_VMEM else 24) * 1024 * 1024
    tc_cap = min((budget - state_bytes) // max(per_step, 1),
                 16 if _BIG_VMEM else 8)
    Tc = _largest_divisor_leq(T, tc_cap)
    gt = T // Tc

    stream_idx = lambda i, j, t: (t, i, j)
    state_idx = lambda i, j, t: (i, j)
    in_stream = pl.BlockSpec((Tc, tb, tn), stream_idx)
    spike_spec = pl.BlockSpec((Tc, tb, tn), stream_idx)
    state_in = _resident_spec((tb, tn), state_idx)
    state_out = _resident_spec((tb, tn), state_idx)

    out_shape = (
        jax.ShapeDtypeStruct((T, Bp, Np), jnp.int8),   # spikes per step (0/1)
        jax.ShapeDtypeStruct((Bp, Np), f32),           # V
        jax.ShapeDtypeStruct((Bp, Np), f32),           # V_th
        jax.ShapeDtypeStruct((Bp, Np), f32),           # adaptation_current
        jax.ShapeDtypeStruct((Bp, Np), f32),           # synaptic_efficiency
    )

    vmem_limit = (96 if _BIG_VMEM else 48) * 1024 * 1024

    spikes_seq, V_new, V_th_new, adapt_new, syn_new = pl.pallas_call(
        _lif_seq_kernel,
        out_shape=out_shape,
        grid=(gb, gn, gt),
        in_specs=[in_stream, in_stream,
                  state_in, state_in, state_in, state_in],
        out_specs=(spike_spec, state_out, state_out, state_out, state_out),
        # V, V_th, adaptation, synaptic_efficiency alias their state outputs:
        # no extra (B, N) HBM buffers for the recurrent state.
        input_output_aliases={2: 1, 3: 2, 4: 3, 5: 4},
        compiler_params=pltpu.CompilerParams(
            dimension_semantics=("parallel", "parallel", "arbitrary"),
            vmem_limit_bytes=vmem_limit,
        ),
    )(I_seq, mod_seq, V.astype(f32), V_th.astype(f32),
      adaptation_current.astype(f32), synaptic_efficiency.astype(f32))

    if pb or pn:
        spikes_seq = spikes_seq[:, :B, :N]
        V_new = V_new[:B, :N]
        V_th_new = V_th_new[:B, :N]
        adapt_new = adapt_new[:B, :N]
        syn_new = syn_new[:B, :N]

    new_state = {
        "V": V_new,
        "V_th": V_th_new,
        "adaptation_current": adapt_new,
        "synaptic_efficiency": syn_new,
    }
    return spikes_seq, new_state


lif_forward_sequence = _lif_forward_sequence_impl


def lif_forward(I, external_modulation, V, V_th, adaptation_current,
                synaptic_efficiency):
    """Single LIF time step (T=1 wrapper around the fused-sequence kernel)."""
    spikes_seq, state = lif_forward_sequence(
        I[None], external_modulation[None], V, V_th,
        adaptation_current, synaptic_efficiency)
    return spikes_seq[0], state


# ------------------------------- demo -----------------------------------------
if __name__ == "__main__":
    T = 8
    batch_size = 8
    num_neurons = 256

    key = jax.random.PRNGKey(0)
    k_i, k_mod = jax.random.split(key)

    # Deterministic example inputs: T-step current / modulation sequences.
    # (bf16 streams are also accepted and halve HBM traffic; the demo keeps
    #  f32 to match the PyTorch reference numerics.)
    I_seq = jax.random.normal(k_i, (T, batch_size, num_neurons), jnp.float32) * 5.0
    mod_seq = jax.random.normal(k_mod, (T, batch_size, num_neurons), jnp.float32)

    # Initial buffers exactly as in LIFNeuronGroup.__init__ / resize().
    V = jnp.zeros((batch_size, num_neurons), jnp.float32)
    V_th = jnp.full((batch_size, num_neurons), V_TH_INIT, jnp.float32)
    adaptation_current = jnp.zeros((batch_size, num_neurons), jnp.float32)
    synaptic_efficiency = jnp.ones((batch_size, num_neurons), jnp.float32)

    spikes_seq, state = lif_forward_sequence(
        I_seq, mod_seq, V, V_th, adaptation_current, synaptic_efficiency)
    jax.block_until_ready(spikes_seq)
    jax.block_until_ready(state["V"])

    assert spikes_seq.shape == (T, batch_size, num_neurons)
    assert spikes_seq.dtype == jnp.int8
    assert state["V"].shape == (batch_size, num_neurons)
    assert state["V_th"].shape == (batch_size, num_neurons)
    assert state["adaptation_current"].shape == (batch_size, num_neurons)
    assert state["synaptic_efficiency"].dtype == jnp.float32
    print("KERNEL_OK")
</pallas_src>

<mosaic_0001>
module attributes {stable_mosaic.version = 11 : i64} {
  func.func @_lif_seq_kernel(%arg0: i32, %arg1: i32, %arg2: i32, %arg3: memref<8x8x128xf32, #tpu.memory_space<vmem>>, %arg4: memref<8x8x128xf32, #tpu.memory_space<vmem>>, %arg5: memref<8x128xf32, #tpu.memory_space<vmem>>, %arg6: memref<8x128xf32, #tpu.memory_space<vmem>>, %arg7: memref<8x128xf32, #tpu.memory_space<vmem>>, %arg8: memref<8x128xf32, #tpu.memory_space<vmem>>, %arg9: memref<8x8x128xi8, #tpu.memory_space<vmem>>, %arg10: memref<8x128xf32, #tpu.memory_space<vmem>>, %arg11: memref<8x128xf32, #tpu.memory_space<vmem>>, %arg12: memref<8x128xf32, #tpu.memory_space<vmem>>, %arg13: memref<8x128xf32, #tpu.memory_space<vmem>>) attributes {dimension_semantics = [#tpu.dimension_semantics<parallel>, #tpu.dimension_semantics<parallel>, #tpu.dimension_semantics<arbitrary>], iteration_bounds = array<i64: 1, 2, 1>, scalar_prefetch = 0 : i64, scratch_operands = 0 : i64, tpu.core_type = #tpu.core_type<tc>, window_params = [{transform_indices = @transform_0, window_bounds = array<i64: 8, 8, 128>}, {transform_indices = @transform_1, window_bounds = array<i64: 8, 8, 128>}, {pipeline_mode = #tpu.pipeline_mode<synchronous>, transform_indices = @transform_2, window_bounds = array<i64: 8, 128>}, {pipeline_mode = #tpu.pipeline_mode<synchronous>, transform_indices = @transform_3, window_bounds = array<i64: 8, 128>}, {pipeline_mode = #tpu.pipeline_mode<synchronous>, transform_indices = @transform_4, window_bounds = array<i64: 8, 128>}, {pipeline_mode = #tpu.pipeline_mode<synchronous>, transform_indices = @transform_5, window_bounds = array<i64: 8, 128>}, {transform_indices = @transform_6, window_bounds = array<i64: 8, 8, 128>}, {pipeline_mode = #tpu.pipeline_mode<synchronous>, transform_indices = @transform_7, window_bounds = array<i64: 8, 128>}, {pipeline_mode = #tpu.pipeline_mode<synchronous>, transform_indices = @transform_8, window_bounds = array<i64: 8, 128>}, {pipeline_mode = #tpu.pipeline_mode<synchronous>, transform_indices = @transform_9, window_bounds = array<i64: 8, 128>}, {pipeline_mode = #tpu.pipeline_mode<synchronous>, transform_indices = @transform_10, window_bounds = array<i64: 8, 128>}]} {
    %c0_i32 = arith.constant 0 : i32
    %0 = arith.cmpi eq, %arg2, %c0_i32 : i32
    %1 = arith.extui %0 : i1 to i32
    %c0_i32_0 = arith.constant 0 : i32
    %2 = arith.cmpi ne, %1, %c0_i32_0 : i32
    scf.if %2 {
      %c0_146 = arith.constant 0 : index
      %c0_147 = arith.constant 0 : index
      %377 = vector.load %arg5[%c0_146, %c0_147] : memref<8x128xf32, #tpu.memory_space<vmem>>, vector<8x128xf32>
      %c0_148 = arith.constant 0 : index
      %c0_149 = arith.constant 0 : index
      %378 = vector.load %arg10[%c0_148, %c0_149] : memref<8x128xf32, #tpu.memory_space<vmem>>, vector<8x128xf32>
      tpu.vector_store %arg10[%c0_148, %c0_149], %377 {strides = array<i32>} : memref<8x128xf32, #tpu.memory_space<vmem>>, vector<8x128xf32>,
      %c0_150 = arith.constant 0 : index
      %c0_151 = arith.constant 0 : index
      %379 = vector.load %arg7[%c0_150, %c0_151] : memref<8x128xf32, #tpu.memory_space<vmem>>, vector<8x128xf32>
      %c0_152 = arith.constant 0 : index
      %c0_153 = arith.constant 0 : index
      %380 = vector.load %arg12[%c0_152, %c0_153] : memref<8x128xf32, #tpu.memory_space<vmem>>, vector<8x128xf32>
      tpu.vector_store %arg12[%c0_152, %c0_153], %379 {strides = array<i32>} : memref<8x128xf32, #tpu.memory_space<vmem>>, vector<8x128xf32>,
      %c0_154 = arith.constant 0 : index
      %c0_155 = arith.constant 0 : index
      %381 = vector.load %arg8[%c0_154, %c0_155] : memref<8x128xf32, #tpu.memory_space<vmem>>, vector<8x128xf32>
      %c0_156 = arith.constant 0 : index
      %c0_157 = arith.constant 0 : index
      %382 = vector.load %arg13[%c0_156, %c0_157] : memref<8x128xf32, #tpu.memory_space<vmem>>, vector<8x128xf32>
      tpu.vector_store %arg13[%c0_156, %c0_157], %381 {strides = array<i32>} : memref<8x128xf32, #tpu.memory_space<vmem>>, vector<8x128xf32>,
      %c0_158 = arith.constant 0 : index
      %c0_159 = arith.constant 0 : index
      %383 = vector.load %arg6[%c0_158, %c0_159] : memref<8x128xf32, #tpu.memory_space<vmem>>, vector<8x128xf32>
      %c0_160 = arith.constant 0 : index
      %c0_161 = arith.constant 0 : index
      %384 = vector.load %arg11[%c0_160, %c0_161] : memref<8x128xf32, #tpu.memory_space<vmem>>, vector<8x128xf32>
      tpu.vector_store %arg11[%c0_160, %c0_161], %383 {strides = array<i32>} : memref<8x128xf32, #tpu.memory_space<vmem>>, vector<8x128xf32>,
    } else {
    }
    %c0 = arith.constant 0 : index
    %c0_1 = arith.constant 0 : index
    %3 = vector.load %arg11[%c0, %c0_1] : memref<8x128xf32, #tpu.memory_space<vmem>>, vector<8x128xf32>
    %cst = arith.constant 5.000000e-01 : f32
    %cst_2 = arith.constant 2.000000e+00 : f32
    %4 = vector.broadcast %cst : f32 to vector<8x128xf32>
    %5 = arith.maximumf %4, %3 : vector<8x128xf32>
    %6 = vector.broadcast %cst_2 : f32 to vector<8x128xf32>
    %7 = arith.minimumf %6, %5 : vector<8x128xf32>
    %c0_3 = arith.constant 0 : index
    %c0_4 = arith.constant 0 : index
    %8 = vector.load %arg10[%c0_3, %c0_4] : memref<8x128xf32, #tpu.memory_space<vmem>>, vector<8x128xf32>
    %c0_5 = arith.constant 0 : index
    %c0_6 = arith.constant 0 : index
    %9 = vector.load %arg12[%c0_5, %c0_6] : memref<8x128xf32, #tpu.memory_space<vmem>>, vector<8x128xf32>
    %c0_7 = arith.constant 0 : index
    %c0_8 = arith.constant 0 : index
    %10 = vector.load %arg13[%c0_7, %c0_8] : memref<8x128xf32, #tpu.memory_space<vmem>>, vector<8x128xf32>
    %c0_i32_9 = arith.constant 0 : i32
    %11 = arith.index_cast %c0_i32_9 : i32 to index
    %c0_10 = arith.constant 0 : index
    %c0_11 = arith.constant 0 : index
    %12 = vector.load %arg3[%11, %c0_10, %c0_11] : memref<8x8x128xf32, #tpu.memory_space<vmem>>, vector<1x8x128xf32>
    %13 = vector.shape_cast %12 : vector<1x8x128xf32> to vector<8x128xf32>
    %14 = arith.index_cast %c0_i32_9 : i32 to index
    %c0_12 = arith.constant 0 : index
    %c0_13 = arith.constant 0 : index
    %15 = vector.load %arg4[%14, %c0_12, %c0_13] : memref<8x8x128xf32, #tpu.memory_space<vmem>>, vector<1x8x128xf32>
    %16 = vector.shape_cast %15 : vector<1x8x128xf32> to vector<8x128xf32>
    %17 = arith.negf %16 : vector<8x128xf32>
    %18 = math.exp %17 : vector<8x128xf32>
    %cst_14 = arith.constant 1.000000e+00 : f32
    %19 = vector.broadcast %cst_14 : f32 to vector<8x128xf32>
    %20 = arith.addf %19, %18 : vector<8x128xf32>
    %21 = arith.divf %19, %20 : vector<8x128xf32>
    %22 = arith.mulf %13, %10 : vector<8x128xf32>
    %23 = arith.addf %22, %21 : vector<8x128xf32>
    %24 = arith.subf %23, %9 : vector<8x128xf32>
    %25 = arith.subf %24, %8 : vector<8x128xf32>
    %cst_15 = arith.constant 5.000000e-02 : f32
    %26 = vector.broadcast %cst_15 : f32 to vector<8x128xf32>
    %27 = arith.mulf %25, %26 : vector<8x128xf32>
    %28 = arith.addf %8, %27 : vector<8x128xf32>
    %29 = arith.subf %28, %3 : vector<8x128xf32>
    %cst_16 = arith.constant 0.000000e+00 : f32
    %30 = vector.broadcast %cst_16 : f32 to vector<8x128xf32>
    %31 = arith.cmpf ogt, %29, %30 : vector<8x128xf32>
    %32 = arith.extui %31 : vector<8x128xi1> to vector<8x128xi32>
    %33 = arith.sitofp %32 : vector<8x128xi32> to vector<8x128xf32>
    %cst_17 = arith.constant 0.000000e+00 : f32
    %34 = vector.broadcast %cst_17 : f32 to vector<8x128xf32>
    %35 = arith.select %31, %34, %28 : vector<8x128xi1>, vector<8x128xf32>
    %cst_18 = arith.constant 0.899999976 : f32
    %36 = vector.broadcast %cst_18 : f32 to vector<8x128xf32>
    %37 = arith.mulf %9, %36 : vector<8x128xf32>
    %cst_19 = arith.constant 5.000000e-01 : f32
    %38 = vector.broadcast %cst_19 : f32 to vector<8x128xf32>
    %39 = arith.mulf %38, %33 : vector<8x128xf32>
    %40 = arith.addf %37, %39 : vector<8x128xf32>
    %cst_20 = arith.constant 1.000000e-01 : f32
    %41 = vector.broadcast %cst_20 : f32 to vector<8x128xf32>
    %42 = arith.mulf %41, %33 : vector<8x128xf32>
    %cst_21 = arith.constant 1.000000e+00 : f32
    %43 = vector.broadcast %cst_21 : f32 to vector<8x128xf32>
    %44 = arith.subf %43, %42 : vector<8x128xf32>
    %45 = arith.mulf %10, %44 : vector<8x128xf32>
    %cst_22 = arith.constant 1.000000e+00 : f32
    %46 = vector.broadcast %cst_22 : f32 to vector<8x128xf32>
    %47 = arith.subf %46, %10 : vector<8x128xf32>
    %cst_23 = arith.constant 5.000000e-02 : f32
    %48 = vector.broadcast %cst_23 : f32 to vector<8x128xf32>
    %49 = arith.mulf %48, %47 : vector<8x128xf32>
    %50 = arith.addf %45, %49 : vector<8x128xf32>
    %51 = arith.extui %31 : vector<8x128xi1> to vector<8x128xi8>
    %52 = arith.index_cast %c0_i32_9 : i32 to index
    %c0_24 = arith.constant 0 : index
    %c0_25 = arith.constant 0 : index
    %53 = vector.load %arg9[%52, %c0_24, %c0_25] : memref<8x8x128xi8, #tpu.memory_space<vmem>>, vector<1x8x128xi8>
    %54 = vector.shape_cast %53 : vector<1x8x128xi8> to vector<8x128xi8>
    %55 = vector.shape_cast %51 : vector<8x128xi8> to vector<1x8x128xi8>
    tpu.vector_store %arg9[%52, %c0_24, %c0_25], %55 {strides = array<i32>} : memref<8x8x128xi8, #tpu.memory_space<vmem>>, vector<1x8x128xi8>,
    %c1_i32 = arith.constant 1 : i32
    %56 = arith.index_cast %c1_i32 : i32 to index
    %c0_26 = arith.constant 0 : index
    %c0_27 = arith.constant 0 : index
    %57 = vector.load %arg3[%56, %c0_26, %c0_27] : memref<8x8x128xf32, #tpu.memory_space<vmem>>, vector<1x8x128xf32>
    %58 = vector.shape_cast %57 : vector<1x8x128xf32> to vector<8x128xf32>
    %59 = arith.index_cast %c1_i32 : i32 to index
    %c0_28 = arith.constant 0 : index
    %c0_29 = arith.constant 0 : index
    %60 = vector.load %arg4[%59, %c0_28, %c0_29] : memref<8x8x128xf32, #tpu.memory_space<vmem>>, vector<1x8x128xf32>
    %61 = vector.shape_cast %60 : vector<1x8x128xf32> to vector<8x128xf32>
    %62 = arith.negf %61 : vector<8x128xf32>
    %63 = math.exp %62 : vector<8x128xf32>
    %cst_30 = arith.constant 1.000000e+00 : f32
    %64 = vector.broadcast %cst_30 : f32 to vector<8x128xf32>
    %65 = arith.addf %64, %63 : vector<8x128xf32>
    %66 = arith.divf %64, %65 : vector<8x128xf32>
    %67 = arith.mulf %58, %50 : vector<8x128xf32>
    %68 = arith.addf %67, %66 : vector<8x128xf32>
    %69 = arith.subf %68, %40 : vector<8x128xf32>
    %70 = arith.subf %69, %35 : vector<8x128xf32>
    %cst_31 = arith.constant 5.000000e-02 : f32
    %71 = vector.broadcast %cst_31 : f32 to vector<8x128xf32>
    %72 = arith.mulf %70, %71 : vector<8x128xf32>
    %73 = arith.addf %35, %72 : vector<8x128xf32>
    %74 = arith.subf %73, %7 : vector<8x128xf32>
    %cst_32 = arith.constant 0.000000e+00 : f32
    %75 = vector.broadcast %cst_32 : f32 to vector<8x128xf32>
    %76 = arith.cmpf ogt, %74, %75 : vector<8x128xf32>
    %77 = arith.extui %76 : vector<8x128xi1> to vector<8x128xi32>
    %78 = arith.sitofp %77 : vector<8x128xi32> to vector<8x128xf32>
    %cst_33 = arith.constant 0.000000e+00 : f32
    %79 = vector.broadcast %cst_33 : f32 to vector<8x128xf32>
    %80 = arith.select %76, %79, %73 : vector<8x128xi1>, vector<8x128xf32>
    %cst_34 = arith.constant 0.899999976 : f32
    %81 = vector.broadcast %cst_34 : f32 to vector<8x128xf32>
    %82 = arith.mulf %40, %81 : vector<8x128xf32>
    %cst_35 = arith.constant 5.000000e-01 : f32
    %83 = vector.broadcast %cst_35 : f32 to vector<8x128xf32>
    %84 = arith.mulf %83, %78 : vector<8x128xf32>
    %85 = arith.addf %82, %84 : vector<8x128xf32>
    %cst_36 = arith.constant 1.000000e-01 : f32
    %86 = vector.broadcast %cst_36 : f32 to vector<8x128xf32>
    %87 = arith.mulf %86, %78 : vector<8x128xf32>
    %cst_37 = arith.constant 1.000000e+00 : f32
    %88 = vector.broadcast %cst_37 : f32 to vector<8x128xf32>
    %89 = arith.subf %88, %87 : vector<8x128xf32>
    %90 = arith.mulf %50, %89 : vector<8x128xf32>
    %cst_38 = arith.constant 1.000000e+00 : f32
    %91 = vector.broadcast %cst_38 : f32 to vector<8x128xf32>
    %92 = arith.subf %91, %50 : vector<8x128xf32>
    %cst_39 = arith.constant 5.000000e-02 : f32
    %93 = vector.broadcast %cst_39 : f32 to vector<8x128xf32>
    %94 = arith.mulf %93, %92 : vector<8x128xf32>
    %95 = arith.addf %90, %94 : vector<8x128xf32>
    %96 = arith.extui %76 : vector<8x128xi1> to vector<8x128xi8>
    %97 = arith.index_cast %c1_i32 : i32 to index
    %c0_40 = arith.constant 0 : index
    %c0_41 = arith.constant 0 : index
    %98 = vector.load %arg9[%97, %c0_40, %c0_41] : memref<8x8x128xi8, #tpu.memory_space<vmem>>, vector<1x8x128xi8>
    %99 = vector.shape_cast %98 : vector<1x8x128xi8> to vector<8x128xi8>
    %100 = vector.shape_cast %96 : vector<8x128xi8> to vector<1x8x128xi8>
    tpu.vector_store %arg9[%97, %c0_40, %c0_41], %100 {strides = array<i32>} : memref<8x8x128xi8, #tpu.memory_space<vmem>>, vector<1x8x128xi8>,
    %c2_i32 = arith.constant 2 : i32
    %101 = arith.index_cast %c2_i32 : i32 to index
    %c0_42 = arith.constant 0 : index
    %c0_43 = arith.constant 0 : index
    %102 = vector.load %arg3[%101, %c0_42, %c0_43] : memref<8x8x128xf32, #tpu.memory_space<vmem>>, vector<1x8x128xf32>
    %103 = vector.shape_cast %102 : vector<1x8x128xf32> to vector<8x128xf32>
    %104 = arith.index_cast %c2_i32 : i32 to index
    %c0_44 = arith.constant 0 : index
    %c0_45 = arith.constant 0 : index
    %105 = vector.load %arg4[%104, %c0_44, %c0_45] : memref<8x8x128xf32, #tpu.memory_space<vmem>>, vector<1x8x128xf32>
    %106 = vector.shape_cast %105 : vector<1x8x128xf32> to vector<8x128xf32>
    %107 = arith.negf %106 : vector<8x128xf32>
    %108 = math.exp %107 : vector<8x128xf32>
    %cst_46 = arith.constant 1.000000e+00 : f32
    %109 = vector.broadcast %cst_46 : f32 to vector<8x128xf32>
    %110 = arith.addf %109, %108 : vector<8x128xf32>
    %111 = arith.divf %109, %110 : vector<8x128xf32>
    %112 = arith.mulf %103, %95 : vector<8x128xf32>
    %113 = arith.addf %112, %111 : vector<8x128xf32>
    %114 = arith.subf %113, %85 : vector<8x128xf32>
    %115 = arith.subf %114, %80 : vector<8x128xf32>
    %cst_47 = arith.constant 5.000000e-02 : f32
    %116 = vector.broadcast %cst_47 : f32 to vector<8x128xf32>
    %117 = arith.mulf %115, %116 : vector<8x128xf32>
    %118 = arith.addf %80, %117 : vector<8x128xf32>
    %119 = arith.subf %118, %7 : vector<8x128xf32>
    %cst_48 = arith.constant 0.000000e+00 : f32
    %120 = vector.broadcast %cst_48 : f32 to vector<8x128xf32>
    %121 = arith.cmpf ogt, %119, %120 : vector<8x128xf32>
    %122 = arith.extui %121 : vector<8x128xi1> to vector<8x128xi32>
    %123 = arith.sitofp %122 : vector<8x128xi32> to vector<8x128xf32>
    %cst_49 = arith.constant 0.000000e+00 : f32
    %124 = vector.broadcast %cst_49 : f32 to vector<8x128xf32>
    %125 = arith.select %121, %124, %118 : vector<8x128xi1>, vector<8x128xf32>
    %cst_50 = arith.constant 0.899999976 : f32
    %126 = vector.broadcast %cst_50 : f32 to vector<8x128xf32>
    %127 = arith.mulf %85, %126 : vector<8x128xf32>
    %cst_51 = arith.constant 5.000000e-01 : f32
    %128 = vector.broadcast %cst_51 : f32 to vector<8x128xf32>
    %129 = arith.mulf %128, %123 : vector<8x128xf32>
    %130 = arith.addf %127, %129 : vector<8x128xf32>
    %cst_52 = arith.constant 1.000000e-01 : f32
    %131 = vector.broadcast %cst_52 : f32 to vector<8x128xf32>
    %132 = arith.mulf %131, %123 : vector<8x128xf32>
    %cst_53 = arith.constant 1.000000e+00 : f32
    %133 = vector.broadcast %cst_53 : f32 to vector<8x128xf32>
    %134 = arith.subf %133, %132 : vector<8x128xf32>
    %135 = arith.mulf %95, %134 : vector<8x128xf32>
    %cst_54 = arith.constant 1.000000e+00 : f32
    %136 = vector.broadcast %cst_54 : f32 to vector<8x128xf32>
    %137 = arith.subf %136, %95 : vector<8x128xf32>
    %cst_55 = arith.constant 5.000000e-02 : f32
    %138 = vector.broadcast %cst_55 : f32 to vector<8x128xf32>
    %139 = arith.mulf %138, %137 : vector<8x128xf32>
    %140 = arith.addf %135, %139 : vector<8x128xf32>
    %141 = arith.extui %121 : vector<8x128xi1> to vector<8x128xi8>
    %142 = arith.index_cast %c2_i32 : i32 to index
    %c0_56 = arith.constant 0 : index
    %c0_57 = arith.constant 0 : index
    %143 = vector.load %arg9[%142, %c0_56, %c0_57] : memref<8x8x128xi8, #tpu.memory_space<vmem>>, vector<1x8x128xi8>
    %144 = vector.shape_cast %143 : vector<1x8x128xi8> to vector<8x128xi8>
    %145 = vector.shape_cast %141 : vector<8x128xi8> to vector<1x8x128xi8>
    tpu.vector_store %arg9[%142, %c0_56, %c0_57], %145 {strides = array<i32>} : memref<8x8x128xi8, #tpu.memory_space<vmem>>, vector<1x8x128xi8>,
    %c3_i32 = arith.constant 3 : i32
    %146 = arith.index_cast %c3_i32 : i32 to index
    %c0_58 = arith.constant 0 : index
    %c0_59 = arith.constant 0 : index
    %147 = vector.load %arg3[%146, %c0_58, %c0_59] : memref<8x8x128xf32, #tpu.memory_space<vmem>>, vector<1x8x128xf32>
    %148 = vector.shape_cast %147 : vector<1x8x128xf32> to vector<8x128xf32>
    %149 = arith.index_cast %c3_i32 : i32 to index
    %c0_60 = arith.constant 0 : index
    %c0_61 = arith.constant 0 : index
    %150 = vector.load %arg4[%149, %c0_60, %c0_61] : memref<8x8x128xf32, #tpu.memory_space<vmem>>, vector<1x8x128xf32>
    %151 = vector.shape_cast %150 : vector<1x8x128xf32> to vector<8x128xf32>
    %152 = arith.negf %151 : vector<8x128xf32>
    %153 = math.exp %152 : vector<8x128xf32>
    %cst_62 = arith.constant 1.000000e+00 : f32
    %154 = vector.broadcast %cst_62 : f32 to vector<8x128xf32>
    %155 = arith.addf %154, %153 : vector<8x128xf32>
    %156 = arith.divf %154, %155 : vector<8x128xf32>
    %157 = arith.mulf %148, %140 : vector<8x128xf32>
    %158 = arith.addf %157, %156 : vector<8x128xf32>
    %159 = arith.subf %158, %130 : vector<8x128xf32>
    %160 = arith.subf %159, %125 : vector<8x128xf32>
    %cst_63 = arith.constant 5.000000e-02 : f32
    %161 = vector.broadcast %cst_63 : f32 to vector<8x128xf32>
    %162 = arith.mulf %160, %161 : vector<8x128xf32>
    %163 = arith.addf %125, %162 : vector<8x128xf32>
    %164 = arith.subf %163, %7 : vector<8x128xf32>
    %cst_64 = arith.constant 0.000000e+00 : f32
    %165 = vector.broadcast %cst_64 : f32 to vector<8x128xf32>
    %166 = arith.cmpf ogt, %164, %165 : vector<8x128xf32>
    %167 = arith.extui %166 : vector<8x128xi1> to vector<8x128xi32>
    %168 = arith.sitofp %167 : vector<8x128xi32> to vector<8x128xf32>
    %cst_65 = arith.constant 0.000000e+00 : f32
    %169 = vector.broadcast %cst_65 : f32 to vector<8x128xf32>
    %170 = arith.select %166, %169, %163 : vector<8x128xi1>, vector<8x128xf32>
    %cst_66 = arith.constant 0.899999976 : f32
    %171 = vector.broadcast %cst_66 : f32 to vector<8x128xf32>
    %172 = arith.mulf %130, %171 : vector<8x128xf32>
    %cst_67 = arith.constant 5.000000e-01 : f32
    %173 = vector.broadcast %cst_67 : f32 to vector<8x128xf32>
    %174 = arith.mulf %173, %168 : vector<8x128xf32>
    %175 = arith.addf %172, %174 : vector<8x128xf32>
    %cst_68 = arith.constant 1.000000e-01 : f32
    %176 = vector.broadcast %cst_68 : f32 to vector<8x128xf32>
    %177 = arith.mulf %176, %168 : vector<8x128xf32>
    %cst_69 = arith.constant 1.000000e+00 : f32
    %178 = vector.broadcast %cst_69 : f32 to vector<8x128xf32>
    %179 = arith.subf %178, %177 : vector<8x128xf32>
    %180 = arith.mulf %140, %179 : vector<8x128xf32>
    %cst_70 = arith.constant 1.000000e+00 : f32
    %181 = vector.broadcast %cst_70 : f32 to vector<8x128xf32>
    %182 = arith.subf %181, %140 : vector<8x128xf32>
    %cst_71 = arith.constant 5.000000e-02 : f32
    %183 = vector.broadcast %cst_71 : f32 to vector<8x128xf32>
    %184 = arith.mulf %183, %182 : vector<8x128xf32>
    %185 = arith.addf %180, %184 : vector<8x128xf32>
    %186 = arith.extui %166 : vector<8x128xi1> to vector<8x128xi8>
    %187 = arith.index_cast %c3_i32 : i32 to index
    %c0_72 = arith.constant 0 : index
    %c0_73 = arith.constant 0 : index
    %188 = vector.load %arg9[%187, %c0_72, %c0_73] : memref<8x8x128xi8, #tpu.memory_space<vmem>>, vector<1x8x128xi8>
    %189 = vector.shape_cast %188 : vector<1x8x128xi8> to vector<8x128xi8>
    %190 = vector.shape_cast %186 : vector<8x128xi8> to vector<1x8x128xi8>
    tpu.vector_store %arg9[%187, %c0_72, %c0_73], %190 {strides = array<i32>} : memref<8x8x128xi8, #tpu.memory_space<vmem>>, vector<1x8x128xi8>,
    %c4_i32 = arith.constant 4 : i32
    %191 = arith.index_cast %c4_i32 : i32 to index
    %c0_74 = arith.constant 0 : index
    %c0_75 = arith.constant 0 : index
    %192 = vector.load %arg3[%191, %c0_74, %c0_75] : memref<8x8x128xf32, #tpu.memory_space<vmem>>, vector<1x8x128xf32>
    %193 = vector.shape_cast %192 : vector<1x8x128xf32> to vector<8x128xf32>
    %194 = arith.index_cast %c4_i32 : i32 to index
    %c0_76 = arith.constant 0 : index
    %c0_77 = arith.constant 0 : index
    %195 = vector.load %arg4[%194, %c0_76, %c0_77] : memref<8x8x128xf32, #tpu.memory_space<vmem>>, vector<1x8x128xf32>
    %196 = vector.shape_cast %195 : vector<1x8x128xf32> to vector<8x128xf32>
    %197 = arith.negf %196 : vector<8x128xf32>
    %198 = math.exp %197 : vector<8x128xf32>
    %cst_78 = arith.constant 1.000000e+00 : f32
    %199 = vector.broadcast %cst_78 : f32 to vector<8x128xf32>
    %200 = arith.addf %199, %198 : vector<8x128xf32>
    %201 = arith.divf %199, %200 : vector<8x128xf32>
    %202 = arith.mulf %193, %185 : vector<8x128xf32>
    %203 = arith.addf %202, %201 : vector<8x128xf32>
    %204 = arith.subf %203, %175 : vector<8x128xf32>
    %205 = arith.subf %204, %170 : vector<8x128xf32>
    %cst_79 = arith.constant 5.000000e-02 : f32
    %206 = vector.broadcast %cst_79 : f32 to vector<8x128xf32>
    %207 = arith.mulf %205, %206 : vector<8x128xf32>
    %208 = arith.addf %170, %207 : vector<8x128xf32>
    %209 = arith.subf %208, %7 : vector<8x128xf32>
    %cst_80 = arith.constant 0.000000e+00 : f32
    %210 = vector.broadcast %cst_80 : f32 to vector<8x128xf32>
    %211 = arith.cmpf ogt, %209, %210 : vector<8x128xf32>
    %212 = arith.extui %211 : vector<8x128xi1> to vector<8x128xi32>
    %213 = arith.sitofp %212 : vector<8x128xi32> to vector<8x128xf32>
    %cst_81 = arith.constant 0.000000e+00 : f32
    %214 = vector.broadcast %cst_81 : f32 to vector<8x128xf32>
    %215 = arith.select %211, %214, %208 : vector<8x128xi1>, vector<8x128xf32>
    %cst_82 = arith.constant 0.899999976 : f32
    %216 = vector.broadcast %cst_82 : f32 to vector<8x128xf32>
    %217 = arith.mulf %175, %216 : vector<8x128xf32>
    %cst_83 = arith.constant 5.000000e-01 : f32
    %218 = vector.broadcast %cst_83 : f32 to vector<8x128xf32>
    %219 = arith.mulf %218, %213 : vector<8x128xf32>
    %220 = arith.addf %217, %219 : vector<8x128xf32>
    %cst_84 = arith.constant 1.000000e-01 : f32
    %221 = vector.broadcast %cst_84 : f32 to vector<8x128xf32>
    %222 = arith.mulf %221, %213 : vector<8x128xf32>
    %cst_85 = arith.constant 1.000000e+00 : f32
    %223 = vector.broadcast %cst_85 : f32 to vector<8x128xf32>
    %224 = arith.subf %223, %222 : vector<8x128xf32>
    %225 = arith.mulf %185, %224 : vector<8x128xf32>
    %cst_86 = arith.constant 1.000000e+00 : f32
    %226 = vector.broadcast %cst_86 : f32 to vector<8x128xf32>
    %227 = arith.subf %226, %185 : vector<8x128xf32>
    %cst_87 = arith.constant 5.000000e-02 : f32
    %228 = vector.broadcast %cst_87 : f32 to vector<8x128xf32>
    %229 = arith.mulf %228, %227 : vector<8x128xf32>
    %230 = arith.addf %225, %229 : vector<8x128xf32>
    %231 = arith.extui %211 : vector<8x128xi1> to vector<8x128xi8>
    %232 = arith.index_cast %c4_i32 : i32 to index
    %c0_88 = arith.constant 0 : index
    %c0_89 = arith.constant 0 : index
    %233 = vector.load %arg9[%232, %c0_88, %c0_89] : memref<8x8x128xi8, #tpu.memory_space<vmem>>, vector<1x8x128xi8>
    %234 = vector.shape_cast %233 : vector<1x8x128xi8> to vector<8x128xi8>
    %235 = vector.shape_cast %231 : vector<8x128xi8> to vector<1x8x128xi8>
    tpu.vector_store %arg9[%232, %c0_88, %c0_89], %235 {strides = array<i32>} : memref<8x8x128xi8, #tpu.memory_space<vmem>>, vector<1x8x128xi8>,
    %c5_i32 = arith.constant 5 : i32
    %236 = arith.index_cast %c5_i32 : i32 to index
    %c0_90 = arith.constant 0 : index
    %c0_91 = arith.constant 0 : index
    %237 = vector.load %arg3[%236, %c0_90, %c0_91] : memref<8x8x128xf32, #tpu.memory_space<vmem>>, vector<1x8x128xf32>
    %238 = vector.shape_cast %237 : vector<1x8x128xf32> to vector<8x128xf32>
    %239 = arith.index_cast %c5_i32 : i32 to index
    %c0_92 = arith.constant 0 : index
    %c0_93 = arith.constant 0 : index
    %240 = vector.load %arg4[%239, %c0_92, %c0_93] : memref<8x8x128xf32, #tpu.memory_space<vmem>>, vector<1x8x128xf32>
    %241 = vector.shape_cast %240 : vector<1x8x128xf32> to vector<8x128xf32>
    %242 = arith.negf %241 : vector<8x128xf32>
    %243 = math.exp %242 : vector<8x128xf32>
    %cst_94 = arith.constant 1.000000e+00 : f32
    %244 = vector.broadcast %cst_94 : f32 to vector<8x128xf32>
    %245 = arith.addf %244, %243 : vector<8x128xf32>
    %246 = arith.divf %244, %245 : vector<8x128xf32>
    %247 = arith.mulf %238, %230 : vector<8x128xf32>
    %248 = arith.addf %247, %246 : vector<8x128xf32>
    %249 = arith.subf %248, %220 : vector<8x128xf32>
    %250 = arith.subf %249, %215 : vector<8x128xf32>
    %cst_95 = arith.constant 5.000000e-02 : f32
    %251 = vector.broadcast %cst_95 : f32 to vector<8x128xf32>
    %252 = arith.mulf %250, %251 : vector<8x128xf32>
    %253 = arith.addf %215, %252 : vector<8x128xf32>
    %254 = arith.subf %253, %7 : vector<8x128xf32>
    %cst_96 = arith.constant 0.000000e+00 : f32
    %255 = vector.broadcast %cst_96 : f32 to vector<8x128xf32>
    %256 = arith.cmpf ogt, %254, %255 : vector<8x128xf32>
    %257 = arith.extui %256 : vector<8x128xi1> to vector<8x128xi32>
    %258 = arith.sitofp %257 : vector<8x128xi32> to vector<8x128xf32>
    %cst_97 = arith.constant 0.000000e+00 : f32
    %259 = vector.broadcast %cst_97 : f32 to vector<8x128xf32>
    %260 = arith.select %256, %259, %253 : vector<8x128xi1>, vector<8x128xf32>
    %cst_98 = arith.constant 0.899999976 : f32
    %261 = vector.broadcast %cst_98 : f32 to vector<8x128xf32>
    %262 = arith.mulf %220, %261 : vector<8x128xf32>
    %cst_99 = arith.constant 5.000000e-01 : f32
    %263 = vector.broadcast %cst_99 : f32 to vector<8x128xf32>
    %264 = arith.mulf %263, %258 : vector<8x128xf32>
    %265 = arith.addf %262, %264 : vector<8x128xf32>
    %cst_100 = arith.constant 1.000000e-01 : f32
    %266 = vector.broadcast %cst_100 : f32 to vector<8x128xf32>
    %267 = arith.mulf %266, %258 : vector<8x128xf32>
    %cst_101 = arith.constant 1.000000e+00 : f32
    %268 = vector.broadcast %cst_101 : f32 to vector<8x128xf32>
    %269 = arith.subf %268, %267 : vector<8x128xf32>
    %270 = arith.mulf %230, %269 : vector<8x128xf32>
    %cst_102 = arith.constant 1.000000e+00 : f32
    %271 = vector.broadcast %cst_102 : f32 to vector<8x128xf32>
    %272 = arith.subf %271, %230 : vector<8x128xf32>
    %cst_103 = arith.constant 5.000000e-02 : f32
    %273 = vector.broadcast %cst_103 : f32 to vector<8x128xf32>
    %274 = arith.mulf %273, %272 : vector<8x128xf32>
    %275 = arith.addf %270, %274 : vector<8x128xf32>
    %276 = arith.extui %256 : vector<8x128xi1> to vector<8x128xi8>
    %277 = arith.index_cast %c5_i32 : i32 to index
    %c0_104 = arith.constant 0 : index
    %c0_105 = arith.constant 0 : index
    %278 = vector.load %arg9[%277, %c0_104, %c0_105] : memref<8x8x128xi8, #tpu.memory_space<vmem>>, vector<1x8x128xi8>
    %279 = vector.shape_cast %278 : vector<1x8x128xi8> to vector<8x128xi8>
    %280 = vector.shape_cast %276 : vector<8x128xi8> to vector<1x8x128xi8>
    tpu.vector_store %arg9[%277, %c0_104, %c0_105], %280 {strides = array<i32>} : memref<8x8x128xi8, #tpu.memory_space<vmem>>, vector<1x8x128xi8>,
    %c6_i32 = arith.constant 6 : i32
    %281 = arith.index_cast %c6_i32 : i32 to index
    %c0_106 = arith.constant 0 : index
    %c0_107 = arith.constant 0 : index
    %282 = vector.load %arg3[%281, %c0_106, %c0_107] : memref<8x8x128xf32, #tpu.memory_space<vmem>>, vector<1x8x128xf32>
    %283 = vector.shape_cast %282 : vector<1x8x128xf32> to vector<8x128xf32>
    %284 = arith.index_cast %c6_i32 : i32 to index
    %c0_108 = arith.constant 0 : index
    %c0_109 = arith.constant 0 : index
    %285 = vector.load %arg4[%284, %c0_108, %c0_109] : memref<8x8x128xf32, #tpu.memory_space<vmem>>, vector<1x8x128xf32>
    %286 = vector.shape_cast %285 : vector<1x8x128xf32> to vector<8x128xf32>
    %287 = arith.negf %286 : vector<8x128xf32>
    %288 = math.exp %287 : vector<8x128xf32>
    %cst_110 = arith.constant 1.000000e+00 : f32
    %289 = vector.broadcast %cst_110 : f32 to vector<8x128xf32>
    %290 = arith.addf %289, %288 : vector<8x128xf32>
    %291 = arith.divf %289, %290 : vector<8x128xf32>
    %292 = arith.mulf %283, %275 : vector<8x128xf32>
    %293 = arith.addf %292, %291 : vector<8x128xf32>
    %294 = arith.subf %293, %265 : vector<8x128xf32>
    %295 = arith.subf %294, %260 : vector<8x128xf32>
    %cst_111 = arith.constant 5.000000e-02 : f32
    %296 = vector.broadcast %cst_111 : f32 to vector<8x128xf32>
    %297 = arith.mulf %295, %296 : vector<8x128xf32>
    %298 = arith.addf %260, %297 : vector<8x128xf32>
    %299 = arith.subf %298, %7 : vector<8x128xf32>
    %cst_112 = arith.constant 0.000000e+00 : f32
    %300 = vector.broadcast %cst_112 : f32 to vector<8x128xf32>
    %301 = arith.cmpf ogt, %299, %300 : vector<8x128xf32>
    %302 = arith.extui %301 : vector<8x128xi1> to vector<8x128xi32>
    %303 = arith.sitofp %302 : vector<8x128xi32> to vector<8x128xf32>
    %cst_113 = arith.constant 0.000000e+00 : f32
    %304 = vector.broadcast %cst_113 : f32 to vector<8x128xf32>
    %305 = arith.select %301, %304, %298 : vector<8x128xi1>, vector<8x128xf32>
    %cst_114 = arith.constant 0.899999976 : f32
    %306 = vector.broadcast %cst_114 : f32 to vector<8x128xf32>
    %307 = arith.mulf %265, %306 : vector<8x128xf32>
    %cst_115 = arith.constant 5.000000e-01 : f32
    %308 = vector.broadcast %cst_115 : f32 to vector<8x128xf32>
    %309 = arith.mulf %308, %303 : vector<8x128xf32>
    %310 = arith.addf %307, %309 : vector<8x128xf32>
    %cst_116 = arith.constant 1.000000e-01 : f32
    %311 = vector.broadcast %cst_116 : f32 to vector<8x128xf32>
    %312 = arith.mulf %311, %303 : vector<8x128xf32>
    %cst_117 = arith.constant 1.000000e+00 : f32
    %313 = vector.broadcast %cst_117 : f32 to vector<8x128xf32>
    %314 = arith.subf %313, %312 : vector<8x128xf32>
    %315 = arith.mulf %275, %314 : vector<8x128xf32>
    %cst_118 = arith.constant 1.000000e+00 : f32
    %316 = vector.broadcast %cst_118 : f32 to vector<8x128xf32>
    %317 = arith.subf %316, %275 : vector<8x128xf32>
    %cst_119 = arith.constant 5.000000e-02 : f32
    %318 = vector.broadcast %cst_119 : f32 to vector<8x128xf32>
    %319 = arith.mulf %318, %317 : vector<8x128xf32>
    %320 = arith.addf %315, %319 : vector<8x128xf32>
    %321 = arith.extui %301 : vector<8x128xi1> to vector<8x128xi8>
    %322 = arith.index_cast %c6_i32 : i32 to index
    %c0_120 = arith.constant 0 : index
    %c0_121 = arith.constant 0 : index
    %323 = vector.load %arg9[%322, %c0_120, %c0_121] : memref<8x8x128xi8, #tpu.memory_space<vmem>>, vector<1x8x128xi8>
    %324 = vector.shape_cast %323 : vector<1x8x128xi8> to vector<8x128xi8>
    %325 = vector.shape_cast %321 : vector<8x128xi8> to vector<1x8x128xi8>
    tpu.vector_store %arg9[%322, %c0_120, %c0_121], %325 {strides = array<i32>} : memref<8x8x128xi8, #tpu.memory_space<vmem>>, vector<1x8x128xi8>,
    %c7_i32 = arith.constant 7 : i32
    %326 = arith.index_cast %c7_i32 : i32 to index
    %c0_122 = arith.constant 0 : index
    %c0_123 = arith.constant 0 : index
    %327 = vector.load %arg3[%326, %c0_122, %c0_123] : memref<8x8x128xf32, #tpu.memory_space<vmem>>, vector<1x8x128xf32>
    %328 = vector.shape_cast %327 : vector<1x8x128xf32> to vector<8x128xf32>
    %329 = arith.index_cast %c7_i32 : i32 to index
    %c0_124 = arith.constant 0 : index
    %c0_125 = arith.constant 0 : index
    %330 = vector.load %arg4[%329, %c0_124, %c0_125] : memref<8x8x128xf32, #tpu.memory_space<vmem>>, vector<1x8x128xf32>
    %331 = vector.shape_cast %330 : vector<1x8x128xf32> to vector<8x128xf32>
    %332 = arith.negf %331 : vector<8x128xf32>
    %333 = math.exp %332 : vector<8x128xf32>
    %cst_126 = arith.constant 1.000000e+00 : f32
    %334 = vector.broadcast %cst_126 : f32 to vector<8x128xf32>
    %335 = arith.addf %334, %333 : vector<8x128xf32>
    %336 = arith.divf %334, %335 : vector<8x128xf32>
    %337 = arith.mulf %328, %320 : vector<8x128xf32>
    %338 = arith.addf %337, %336 : vector<8x128xf32>
    %339 = arith.subf %338, %310 : vector<8x128xf32>
    %340 = arith.subf %339, %305 : vector<8x128xf32>
    %cst_127 = arith.constant 5.000000e-02 : f32
    %341 = vector.broadcast %cst_127 : f32 to vector<8x128xf32>
    %342 = arith.mulf %340, %341 : vector<8x128xf32>
    %343 = arith.addf %305, %342 : vector<8x128xf32>
    %344 = arith.subf %343, %7 : vector<8x128xf32>
    %cst_128 = arith.constant 0.000000e+00 : f32
    %345 = vector.broadcast %cst_128 : f32 to vector<8x128xf32>
    %346 = arith.cmpf ogt, %344, %345 : vector<8x128xf32>
    %347 = arith.extui %346 : vector<8x128xi1> to vector<8x128xi32>
    %348 = arith.sitofp %347 : vector<8x128xi32> to vector<8x128xf32>
    %cst_129 = arith.constant 0.000000e+00 : f32
    %349 = vector.broadcast %cst_129 : f32 to vector<8x128xf32>
    %350 = arith.select %346, %349, %343 : vector<8x128xi1>, vector<8x128xf32>
    %cst_130 = arith.constant 0.899999976 : f32
    %351 = vector.broadcast %cst_130 : f32 to vector<8x128xf32>
    %352 = arith.mulf %310, %351 : vector<8x128xf32>
    %cst_131 = arith.constant 5.000000e-01 : f32
    %353 = vector.broadcast %cst_131 : f32 to vector<8x128xf32>
    %354 = arith.mulf %353, %348 : vector<8x128xf32>
    %355 = arith.addf %352, %354 : vector<8x128xf32>
    %cst_132 = arith.constant 1.000000e-01 : f32
    %356 = vector.broadcast %cst_132 : f32 to vector<8x128xf32>
    %357 = arith.mulf %356, %348 : vector<8x128xf32>
    %cst_133 = arith.constant 1.000000e+00 : f32
    %358 = vector.broadcast %cst_133 : f32 to vector<8x128xf32>
    %359 = arith.subf %358, %357 : vector<8x128xf32>
    %360 = arith.mulf %320, %359 : vector<8x128xf32>
    %cst_134 = arith.constant 1.000000e+00 : f32
    %361 = vector.broadcast %cst_134 : f32 to vector<8x128xf32>
    %362 = arith.subf %361, %320 : vector<8x128xf32>
    %cst_135 = arith.constant 5.000000e-02 : f32
    %363 = vector.broadcast %cst_135 : f32 to vector<8x128xf32>
    %364 = arith.mulf %363, %362 : vector<8x128xf32>
    %365 = arith.addf %360, %364 : vector<8x128xf32>
    %366 = arith.extui %346 : vector<8x128xi1> to vector<8x128xi8>
    %367 = arith.index_cast %c7_i32 : i32 to index
    %c0_136 = arith.constant 0 : index
    %c0_137 = arith.constant 0 : index
    %368 = vector.load %arg9[%367, %c0_136, %c0_137] : memref<8x8x128xi8, #tpu.memory_space<vmem>>, vector<1x8x128xi8>
    %369 = vector.shape_cast %368 : vector<1x8x128xi8> to vector<8x128xi8>
    %370 = vector.shape_cast %366 : vector<8x128xi8> to vector<1x8x128xi8>
    tpu.vector_store %arg9[%367, %c0_136, %c0_137], %370 {strides = array<i32>} : memref<8x8x128xi8, #tpu.memory_space<vmem>>, vector<1x8x128xi8>,
    %c8_i32 = arith.constant 8 : i32
    %c0_138 = arith.constant 0 : index
    %c0_139 = arith.constant 0 : index
    %371 = vector.load %arg10[%c0_138, %c0_139] : memref<8x128xf32, #tpu.memory_space<vmem>>, vector<8x128xf32>
    tpu.vector_store %arg10[%c0_138, %c0_139], %350 {strides = array<i32>} : memref<8x128xf32, #tpu.memory_space<vmem>>, vector<8x128xf32>,
    %c0_140 = arith.constant 0 : index
    %c0_141 = arith.constant 0 : index
    %372 = vector.load %arg12[%c0_140, %c0_141] : memref<8x128xf32, #tpu.memory_space<vmem>>, vector<8x128xf32>
    tpu.vector_store %arg12[%c0_140, %c0_141], %355 {strides = array<i32>} : memref<8x128xf32, #tpu.memory_space<vmem>>, vector<8x128xf32>,
    %c0_142 = arith.constant 0 : index
    %c0_143 = arith.constant 0 : index
    %373 = vector.load %arg13[%c0_142, %c0_143] : memref<8x128xf32, #tpu.memory_space<vmem>>, vector<8x128xf32>
    tpu.vector_store %arg13[%c0_142, %c0_143], %365 {strides = array<i32>} : memref<8x128xf32, #tpu.memory_space<vmem>>, vector<8x128xf32>,
    %c0_i32_144 = arith.constant 0 : i32
    %374 = arith.cmpi eq, %arg2, %c0_i32_144 : i32
    %375 = arith.extui %374 : i1 to i32
    %c0_i32_145 = arith.constant 0 : i32
    %376 = arith.cmpi ne, %375, %c0_i32_145 : i32
    scf.if %376 {
      %c0_146 = arith.constant 0 : index
      %c0_147 = arith.constant 0 : index
      %377 = vector.load %arg11[%c0_146, %c0_147] : memref<8x128xf32, #tpu.memory_space<vmem>>, vector<8x128xf32>
      tpu.vector_store %arg11[%c0_146, %c0_147], %7 {strides = array<i32>} : memref<8x128xf32, #tpu.memory_space<vmem>>, vector<8x128xf32>,
    } else {
    }
    return
  }
  func.func @transform_0(%arg0: i32, %arg1: i32, %arg2: i32) -> (i32, i32, i32) {
    %c0_i32 = arith.constant 0 : i32
    return %arg2, %arg0, %arg1 : i32, i32, i32
  }
  func.func @transform_1(%arg0: i32, %arg1: i32, %arg2: i32) -> (i32, i32, i32) {
    %c0_i32 = arith.constant 0 : i32
    return %arg2, %arg0, %arg1 : i32, i32, i32
  }
  func.func @transform_2(%arg0: i32, %arg1: i32, %arg2: i32) -> (i32, i32) {
    %c0_i32 = arith.constant 0 : i32
    return %arg0, %arg1 : i32, i32
  }
  func.func @transform_3(%arg0: i32, %arg1: i32, %arg2: i32) -> (i32, i32) {
    %c0_i32 = arith.constant 0 : i32
    return %arg0, %arg1 : i32, i32
  }
  func.func @transform_4(%arg0: i32, %arg1: i32, %arg2: i32) -> (i32, i32) {
    %c0_i32 = arith.constant 0 : i32
    return %arg0, %arg1 : i32, i32
  }
  func.func @transform_5(%arg0: i32, %arg1: i32, %arg2: i32) -> (i32, i32) {
    %c0_i32 = arith.constant 0 : i32
    return %arg0, %arg1 : i32, i32
  }
  func.func @transform_6(%arg0: i32, %arg1: i32, %arg2: i32) -> (i32, i32, i32) {
    %c0_i32 = arith.constant 0 : i32
    return %arg2, %arg0, %arg1 : i32, i32, i32
  }
  func.func @transform_7(%arg0: i32, %arg1: i32, %arg2: i32) -> (i32, i32) {
    %c0_i32 = arith.constant 0 : i32
    return %arg0, %arg1 : i32, i32
  }
  func.func @transform_8(%arg0: i32, %arg1: i32, %arg2: i32) -> (i32, i32) {
    %c0_i32 = arith.constant 0 : i32
    return %arg0, %arg1 : i32, i32
  }
  func.func @transform_9(%arg0: i32, %arg1: i32, %arg2: i32) -> (i32, i32) {
    %c0_i32 = arith.constant 0 : i32
    return %arg0, %arg1 : i32, i32
  }
  func.func @transform_10(%arg0: i32, %arg1: i32, %arg2: i32) -> (i32, i32) {
    %c0_i32 = arith.constant 0 : i32
    return %arg0, %arg1 : i32, i32
  }
}

</mosaic_0001>

<llo_original>
// kernel: _lif_forward_sequence_impl.1
$region0: #{_lif_forward_sequence_impl.1}
  #allocation0 [shape = 'u32[]', space=smem, size = 0x4, offset = 0x4, fixed_abs, tag = 'smem constant byte address 0x4 - core index']
  #allocation1 [shape = 'u32[144,128]{1,0:T(1,128)}', space=vmem, size = 0x12000, scoped, tag = 'internal scratch']
  %s0 = inlined_call_operand.vmem [shape: f32[8,8,256], index: 0, kind: input, shape index: {}]
  %s1 = inlined_call_operand.hbm [shape: f32[8,8,256], index: 1, kind: input, shape index: {}]
  %s2 = inlined_call_operand.hbm [shape: f32[8,256], index: 2, kind: input, shape index: {}, may-alias: {2,7}]
  %s3 = inlined_call_operand.hbm [shape: f32[8,256], index: 3, kind: input, shape index: {}, may-alias: {3,8}]
  %s4 = inlined_call_operand.hbm [shape: f32[8,256], index: 4, kind: input, shape index: {}, may-alias: {4,9}]
  %s5 = inlined_call_operand.hbm [shape: f32[8,256], index: 5, kind: input, shape index: {}, may-alias: {5,10}]
  %s6 = inlined_call_operand.hbm [shape: s8[8,8,256], index: 6, kind: output, shape index: {0}]
  %s7 = inlined_call_operand.hbm [shape: f32[8,256], index: 7, kind: output, shape index: {1}, may-alias: {2,7}]
  %s8 = inlined_call_operand.hbm [shape: f32[8,256], index: 8, kind: output, shape index: {2}, may-alias: {3,8}]
  %s9 = inlined_call_operand.hbm [shape: f32[8,256], index: 9, kind: output, shape index: {3}, may-alias: {4,9}]
  %s10 = inlined_call_operand.hbm [shape: f32[8,256], index: 10, kind: output, shape index: {4}, may-alias: {5,10}]
  %11 = xla_tuple %s6, %s7, %s8, %s9, %s10
  %s12 = sld [smem:[#allocation0]]
  $region155: #{_lif_forward_sequence_impl.1} parent=0
    _
  %s14 = ssub.s32 1, %s12
  %s15 = scalar_select 0, %s14, %s12
  $region1: #{_lif_forward_sequence_impl.1} parent=0
    #allocation2 [shape = 'u8[65536]{0}', space=vmem, size = 0x10000, scoped, tag = 'input window, operand 0']
    #allocation3 [shape = 'u8[65536]{0}', space=vmem, size = 0x10000, scoped, tag = 'input window, operand 1']
    #allocation4 [shape = 's32[2]{0}', space=sflag, size = 0x8, scoped, tag = 'scoped memory for _lif_forward_sequence_impl.1']
    #allocation5 [shape = 's32[2]{0}', space=sflag, size = 0x8, scoped, tag = 'scoped memory for _lif_forward_sequence_impl.1']
    #allocation6 [shape = 'u8[4096]{0}', space=vmem, size = 0x1000, scoped, tag = 'input window, operand 2, single buffered']
    #allocation7 [shape = 's32[1]{0}', space=sflag, size = 0x4, scoped, tag = 'scoped memory for _lif_forward_sequence_impl.1']
    #allocation8 [shape = 'u8[4096]{0}', space=vmem, size = 0x1000, scoped, tag = 'input window, operand 3, single buffered']
    #allocation9 [shape = 'u8[4096]{0}', space=vmem, size = 0x1000, scoped, tag = 'input window, operand 4, single buffered']
    #allocation10 [shape = 's32[1]{0}', space=sflag, size = 0x4, scoped, tag = 'scoped memory for _lif_forward_sequence_impl.1']
    #allocation11 [shape = 'u8[4096]{0}', space=vmem, size = 0x1000, scoped, tag = 'input window, operand 5, single buffered']
    #allocation12 [shape = 'u8[16384]{0}', space=vmem, size = 0x4000, scoped, tag = 'output window, operand 0']
    #allocation13 [shape = 'u8[4096]{0}', space=vmem, size = 0x1000, scoped, tag = 'output window, operand 1, single buffered']
    #allocation14 [shape = 's32[1]{0}', space=sflag, size = 0x4, scoped, tag = 'scoped memory for _lif_forward_sequence_impl.1']
    #allocation15 [shape = 'u8[4096]{0}', space=vmem, size = 0x1000, scoped, tag = 'output window, operand 2, single buffered']
    #allocation16 [shape = 'u8[4096]{0}', space=vmem, size = 0x1000, scoped, tag = 'output window, operand 3, single buffered']
    #allocation17 [shape = 's32[1]{0}', space=sflag, size = 0x4, scoped, tag = 'scoped memory for _lif_forward_sequence_impl.1']
    #allocation18 [shape = 'u8[4096]{0}', space=vmem, size = 0x1000, scoped, tag = 'output window, operand 4, single buffered']
    %16 = vsyncpa [#allocation4], 0
    %s17 = scalar_lea.sflag [#allocation4], 1
    %18 = vsyncpa %s17, 0
    %19 = vsyncpa [#allocation7], 0
    %20 = vsyncpa [#allocation10], 0
    %21 = vsyncpa [#allocation5], 0
    %s22 = scalar_lea.sflag [#allocation5], 1
    %23 = vsyncpa %s22, 0
    %24 = vsyncpa [#allocation14], 0
    %25 = vsyncpa [#allocation17], 0
    loop: start=0, step=1, limit=4
    $region2: #{_lif_forward_sequence_impl.1} parent=1 // loop_pre_header
      _
    $region3: #{_lif_forward_sequence_impl.1} parent=1 // loop_header
      %s27 = sphi 0, %s31
      %p28 = scmp.ge.s32.totalorder %s27, 4
      %s34 = sphi 0, %s53
      %s35 = sphi 0, %s49
      %s36 = sphi 0, %s45
      %s37 = sphi 0, %s34
      %s38 = sphi 0, %s35
      %s39 = sphi 0, %s36
      %s40 = sphi 0, %s37
      %s41 = sphi 0, %s38
      %s42 = sphi 0, %s39
      %s60 = sphi 0, %s62
      %s63 = sphi 0, %s60
      %s64 = sphi 0, %s63
      %s80 = sphi 0, %s64
      %s90 = sphi 0, %s92
      %s93 = sphi 0, %s90
      %s94 = sphi 0, %s93
      %s110 = sphi 0, %s94
      %s118 = sphi 0, %s120
      %s121 = sphi 0, %s118
      %s122 = sphi 0, %s121
      %s138 = sphi 0, %s122
      %s146 = sphi 0, %s148
      %s149 = sphi 0, %s146
      %s150 = sphi 0, %s149
      %s166 = sphi 0, %s150
      %s174 = sphi 0, %s176
      %s177 = sphi 0, %s174
      %s178 = sphi 0, %s177
      %s194 = sphi 0, %s178
      %s202 = sphi 0, %s204
      %s205 = sphi 0, %s202
      %s206 = sphi 0, %s205
      %s222 = sphi 0, %s206
      %s232 = sphi 0, %s234
      %s235 = sphi 0, %s232
      %s236 = sphi 0, %s235
      %s252 = sphi 0, %s236
      %s260 = sphi 0, %s262
      %s263 = sphi 0, %s260
      %s264 = sphi 0, %s263
      %s280 = sphi 0, %s264
      %s288 = sphi 0, %s290
      %s291 = sphi 0, %s288
      %s292 = sphi 0, %s291
      %s308 = sphi 0, %s292
      %s316 = sphi 0, %s318
      %s319 = sphi 0, %s316
      %s320 = sphi 0, %s319
      %s336 = sphi 0, %s320
      %s344 = sphi 0, %s346
      %s347 = sphi 0, %s344
      %s348 = sphi 0, %s347
      %s364 = sphi 0, %s348
    $region4: #{_lif_forward_sequence_impl.1} parent=1 // loop_header_branch
      %30 = sbr.rel (%p28) target = $region8
    $region5: #{_lif_forward_sequence_impl.1} parent=1 // loop_body
      %s32 = ssub.s32 %s27, 1
      %s33 = ssub.s32 %s27, 2
      %s43 = sadd.s32 1, %s36
      %p44 = scmp.ge.s32.totalorder %s43, 1
      %s45 = scalar_select %p44, 0, %s43
      %s46 = sadd.s32 1, %s35
      %s47 = scalar_select %p44, %s46, %s35
      %p48 = scmp.ge.s32.totalorder %s47, 2
      %s49 = scalar_select %p48, 0, %s47
      %s50 = sadd.s32 1, %s34
      %s51 = scalar_select %p48, %s50, %s34
      %p52 = scmp.ge.s32.totalorder %s51, 1
      %s53 = scalar_select %p52, 0, %s51
      %s54 = ssub.s32 %s36, %s45
      %s55 = ssub.s32 %s34, %s53
      %s56 = sor.u32 %s54, %s55
      %s57 = ssub.s32 %s35, %s49
      %s58 = sor.u32 %s56, %s57
      %p59 = scmp.eq.s32.totalorder %s58, 0
      %s61 = sadd.s32 %s60, 1
      %s62 = scalar_select %p59, %s60, %s61
      %p65 = pneg %p59
      %p66 = scmp.eq.s32.totalorder %s27, 1
      %p67 = por %p65, %p66
      %p68 = scmp.ne.s32.totalorder %s60, %s63
      %p69 = scmp.eq.s32.totalorder %s27, 0
      %p70 = por %p68, %p69
      %p71 = scmp.ne.s32.totalorder %s60, %s63
      %p72 = scmp.eq.s32.totalorder %s32, 1
      %p73 = por %p71, %p72
      %p74 = scmp.ne.s32.totalorder %s63, %s64
      %p75 = scmp.eq.s32.totalorder %s32, 0
      %p76 = por %p74, %p75
      %p77 = scmp.ne.s32.totalorder %s63, %s64
      %p78 = scmp.eq.s32.totalorder %s33, 1
      %p79 = por %p77, %p78
      %p81 = scmp.ne.s32.totalorder %s64, %s80
      %p82 = scmp.eq.s32.totalorder %s33, 0
      %p83 = por %p81, %p82
      %s84 = ssub.s32 %s36, %s45
      %s85 = ssub.s32 %s34, %s53
      %s86 = sor.u32 %s84, %s85
      %s87 = ssub.s32 %s35, %s49
      %s88 = sor.u32 %s86, %s87
      %p89 = scmp.eq.s32.totalorder %s88, 0
      %s91 = sadd.s32 %s90, 1
      %s92 = scalar_select %p89, %s90, %s91
      %p95 = pneg %p89
      %p96 = scmp.eq.s32.totalorder %s27, 1
      %p97 = por %p95, %p96
      %p98 = scmp.ne.s32.totalorder %s90, %s93
      %p99 = scmp.eq.s32.totalorder %s27, 0
      %p100 = por %p98, %p99
      %p101 = scmp.ne.s32.totalorder %s90, %s93
      %p102 = scmp.eq.s32.totalorder %s32, 1
      %p103 = por %p101, %p102
      %p104 = scmp.ne.s32.totalorder %s93, %s94
      %p105 = scmp.eq.s32.totalorder %s32, 0
      %p106 = por %p104, %p105
      %p107 = scmp.ne.s32.totalorder %s93, %s94
      %p108 = scmp.eq.s32.totalorder %s33, 1
      %p109 = por %p107, %p108
      %p111 = scmp.ne.s32.totalorder %s94, %s110
      %p112 = scmp.eq.s32.totalorder %s33, 0
      %p113 = por %p111, %p112
      %s114 = ssub.s32 %s34, %s53
      %s115 = ssub.s32 %s35, %s49
      %s116 = sor.u32 %s114, %s115
      %p117 = scmp.eq.s32.totalorder %s116, 0
      %s119 = sadd.s32 %s118, 1
      %s120 = scalar_select %p117, %s118, %s119
      %p123 = pneg %p117
      %p124 = scmp.eq.s32.totalorder %s27, 1
      %p125 = por %p123, %p124
      %p126 = scmp.ne.s32.totalorder %s118, %s121
      %p127 = scmp.eq.s32.totalorder %s27, 0
      %p128 = por %p126, %p127
      %p129 = scmp.ne.s32.totalorder %s118, %s121
      %p130 = scmp.eq.s32.totalorder %s32, 1
      %p131 = por %p129, %p130
      %p132 = scmp.ne.s32.totalorder %s121, %s122
      %p133 = scmp.eq.s32.totalorder %s32, 0
      %p134 = por %p132, %p133
      %p135 = scmp.ne.s32.totalorder %s121, %s122
      %p136 = scmp.eq.s32.totalorder %s33, 1
      %p137 = por %p135, %p136
      %p139 = scmp.ne.s32.totalorder %s122, %s138
      %p140 = scmp.eq.s32.totalorder %s33, 0
      %p141 = por %p139, %p140
      %s142 = ssub.s32 %s34, %s53
      %s143 = ssub.s32 %s35, %s49
      %s144 = sor.u32 %s142, %s143
      %p145 = scmp.eq.s32.totalorder %s144, 0
      %s147 = sadd.s32 %s146, 1
      %s148 = scalar_select %p145, %s146, %s147
      %p151 = pneg %p145
      %p152 = scmp.eq.s32.totalorder %s27, 1
      %p153 = por %p151, %p152
      %p154 = scmp.ne.s32.totalorder %s146, %s149
      %p155 = scmp.eq.s32.totalorder %s27, 0
      %p156 = por %p154, %p155
      %p157 = scmp.ne.s32.totalorder %s146, %s149
      %p158 = scmp.eq.s32.totalorder %s32, 1
      %p159 = por %p157, %p158
      %p160 = scmp.ne.s32.totalorder %s149, %s150
      %p161 = scmp.eq.s32.totalorder %s32, 0
      %p162 = por %p160, %p161
      %p163 = scmp.ne.s32.totalorder %s149, %s150
      %p164 = scmp.eq.s32.totalorder %s33, 1
      %p165 = por %p163, %p164
      %p167 = scmp.ne.s32.totalorder %s150, %s166
      %p168 = scmp.eq.s32.totalorder %s33, 0
      %p169 = por %p167, %p168
      %s170 = ssub.s32 %s34, %s53
      %s171 = ssub.s32 %s35, %s49
      %s172 = sor.u32 %s170, %s171
      %p173 = scmp.eq.s32.totalorder %s172, 0
      %s175 = sadd.s32 %s174, 1
      %s176 = scalar_select %p173, %s174, %s175
      %p179 = pneg %p173
      %p180 = scmp.eq.s32.totalorder %s27, 1
      %p181 = por %p179, %p180
      %p182 = scmp.ne.s32.totalorder %s174, %s177
      %p183 = scmp.eq.s32.totalorder %s27, 0
      %p184 = por %p182, %p183
      %p185 = scmp.ne.s32.totalorder %s174, %s177
      %p186 = scmp.eq.s32.totalorder %s32, 1
      %p187 = por %p185, %p186
      %p188 = scmp.ne.s32.totalorder %s177, %s178
      %p189 = scmp.eq.s32.totalorder %s32, 0
      %p190 = por %p188, %p189
      %p191 = scmp.ne.s32.totalorder %s177, %s178
      %p192 = scmp.eq.s32.totalorder %s33, 1
      %p193 = por %p191, %p192
      %p195 = scmp.ne.s32.totalorder %s178, %s194
      %p196 = scmp.eq.s32.totalorder %s33, 0
      %p197 = por %p195, %p196
      %s198 = ssub.s32 %s34, %s53
      %s199 = ssub.s32 %s35, %s49
      %s200 = sor.u32 %s198, %s199
      %p201 = scmp.eq.s32.totalorder %s200, 0
      %s203 = sadd.s32 %s202, 1
      %s204 = scalar_select %p201, %s202, %s203
      %p207 = pneg %p201
      %p208 = scmp.eq.s32.totalorder %s27, 1
      %p209 = por %p207, %p208
      %p210 = scmp.ne.s32.totalorder %s202, %s205
      %p211 = scmp.eq.s32.totalorder %s27, 0
      %p212 = por %p210, %p211
      %p213 = scmp.ne.s32.totalorder %s202, %s205
      %p214 = scmp.eq.s32.totalorder %s32, 1
      %p215 = por %p213, %p214
      %p216 = scmp.ne.s32.totalorder %s205, %s206
      %p217 = scmp.eq.s32.totalorder %s32, 0
      %p218 = por %p216, %p217
      %p219 = scmp.ne.s32.totalorder %s205, %s206
      %p220 = scmp.eq.s32.totalorder %s33, 1
      %p221 = por %p219, %p220
      %p223 = scmp.ne.s32.totalorder %s206, %s222
      %p224 = scmp.eq.s32.totalorder %s33, 0
      %p225 = por %p223, %p224
      %s226 = ssub.s32 %s36, %s45
      %s227 = ssub.s32 %s34, %s53
      %s228 = sor.u32 %s226, %s227
      %s229 = ssub.s32 %s35, %s49
      %s230 = sor.u32 %s228, %s229
      %p231 = scmp.eq.s32.totalorder %s230, 0
      %s233 = sadd.s32 %s232, 1
      %s234 = scalar_select %p231, %s232, %s233
      %p237 = pneg %p231
      %p238 = scmp.eq.s32.totalorder %s27, 1
      %p239 = por %p237, %p238
      %p240 = scmp.ne.s32.totalorder %s232, %s235
      %p241 = scmp.eq.s32.totalorder %s27, 0
      %p242 = por %p240, %p241
      %p243 = scmp.ne.s32.totalorder %s232, %s235
      %p244 = scmp.eq.s32.totalorder %s32, 1
      %p245 = por %p243, %p244
      %p246 = scmp.ne.s32.totalorder %s235, %s236
      %p247 = scmp.eq.s32.totalorder %s32, 0
      %p248 = por %p246, %p247
      %p249 = scmp.ne.s32.totalorder %s235, %s236
      %p250 = scmp.eq.s32.totalorder %s33, 1
      %p251 = por %p249, %p250
      %p253 = scmp.ne.s32.totalorder %s236, %s252
      %p254 = scmp.eq.s32.totalorder %s33, 0
      %p255 = por %p253, %p254
      %s256 = ssub.s32 %s34, %s53
      %s257 = ssub.s32 %s35, %s49
      %s258 = sor.u32 %s256, %s257
      %p259 = scmp.eq.s32.totalorder %s258, 0
      %s261 = sadd.s32 %s260, 1
      %s262 = scalar_select %p259, %s260, %s261
      %p265 = pneg %p259
      %p266 = scmp.eq.s32.totalorder %s27, 1
      %p267 = por %p265, %p266
      %p268 = scmp.ne.s32.totalorder %s260, %s263
      %p269 = scmp.eq.s32.totalorder %s27, 0
      %p270 = por %p268, %p269
      %p271 = scmp.ne.s32.totalorder %s260, %s263
      %p272 = scmp.eq.s32.totalorder %s32, 1
      %p273 = por %p271, %p272
      %p274 = scmp.ne.s32.totalorder %s263, %s264
      %p275 = scmp.eq.s32.totalorder %s32, 0
      %p276 = por %p274, %p275
      %p277 = scmp.ne.s32.totalorder %s263, %s264
      %p278 = scmp.eq.s32.totalorder %s33, 1
      %p279 = por %p277, %p278
      %p281 = scmp.ne.s32.totalorder %s264, %s280
      %p282 = scmp.eq.s32.totalorder %s33, 0
      %p283 = por %p281, %p282
      %s284 = ssub.s32 %s34, %s53
      %s285 = ssub.s32 %s35, %s49
      %s286 = sor.u32 %s284, %s285
      %p287 = scmp.eq.s32.totalorder %s286, 0
      %s289 = sadd.s32 %s288, 1
      %s290 = scalar_select %p287, %s288, %s289
      %p293 = pneg %p287
      %p294 = scmp.eq.s32.totalorder %s27, 1
      %p295 = por %p293, %p294
      %p296 = scmp.ne.s32.totalorder %s288, %s291
      %p297 = scmp.eq.s32.totalorder %s27, 0
      %p298 = por %p296, %p297
      %p299 = scmp.ne.s32.totalorder %s288, %s291
      %p300 = scmp.eq.s32.totalorder %s32, 1
      %p301 = por %p299, %p300
      %p302 = scmp.ne.s32.totalorder %s291, %s292
      %p303 = scmp.eq.s32.totalorder %s32, 0
      %p304 = por %p302, %p303
      %p305 = scmp.ne.s32.totalorder %s291, %s292
      %p306 = scmp.eq.s32.totalorder %s33, 1
      %p307 = por %p305, %p306
      %p309 = scmp.ne.s32.totalorder %s292, %s308
      %p310 = scmp.eq.s32.totalorder %s33, 0
      %p311 = por %p309, %p310
      %s312 = ssub.s32 %s34, %s53
      %s313 = ssub.s32 %s35, %s49
      %s314 = sor.u32 %s312, %s313
      %p315 = scmp.eq.s32.totalorder %s314, 0
      %s317 = sadd.s32 %s316, 1
      %s318 = scalar_select %p315, %s316, %s317
      %p321 = pneg %p315
      %p322 = scmp.eq.s32.totalorder %s27, 1
      %p323 = por %p321, %p322
      %p324 = scmp.ne.s32.totalorder %s316, %s319
      %p325 = scmp.eq.s32.totalorder %s27, 0
      %p326 = por %p324, %p325
      %p327 = scmp.ne.s32.totalorder %s316, %s319
      %p328 = scmp.eq.s32.totalorder %s32, 1
      %p329 = por %p327, %p328
      %p330 = scmp.ne.s32.totalorder %s319, %s320
      %p331 = scmp.eq.s32.totalorder %s32, 0
      %p332 = por %p330, %p331
      %p333 = scmp.ne.s32.totalorder %s319, %s320
      %p334 = scmp.eq.s32.totalorder %s33, 1
      %p335 = por %p333, %p334
      %p337 = scmp.ne.s32.totalorder %s320, %s336
      %p338 = scmp.eq.s32.totalorder %s33, 0
      %p339 = por %p337, %p338
      %s340 = ssub.s32 %s34, %s53
      %s341 = ssub.s32 %s35, %s49
      %s342 = sor.u32 %s340, %s341
      %p343 = scmp.eq.s32.totalorder %s342, 0
      %s345 = sadd.s32 %s344, 1
      %s346 = scalar_select %p343, %s344, %s345
      %p349 = pneg %p343
      %p350 = scmp.eq.s32.totalorder %s27, 1
      %p351 = por %p349, %p350
      %p352 = scmp.ne.s32.totalorder %s344, %s347
      %p353 = scmp.eq.s32.totalorder %s27, 0
      %p354 = por %p352, %p353
      %p355 = scmp.ne.s32.totalorder %s344, %s347
      %p356 = scmp.eq.s32.totalorder %s32, 1
      %p357 = por %p355, %p356
      %p358 = scmp.ne.s32.totalorder %s347, %s348
      %p359 = scmp.eq.s32.totalorder %s32, 0
      %p360 = por %p358, %p359
      %p361 = scmp.ne.s32.totalorder %s347, %s348
      %p362 = scmp.eq.s32.totalorder %s33, 1
      %p363 = por %p361, %p362
      %p365 = scmp.ne.s32.totalorder %s348, %s364
      %p366 = scmp.eq.s32.totalorder %s33, 0
      %p367 = por %p365, %p366
      %p368 = scmp.le.s32.totalorder 1, %s27
      %p369 = scmp.lt.s32.totalorder %s27, 3
      %p370 = pnand %p368, %p369
      %p371 = pneg %p370
      // Predicated region
      $region9: #{_lif_forward_sequence_impl.1} parent=5 // pred_check
        _
      $region10: #{_lif_forward_sequence_impl.1} parent=5 // pred_check_branch
        %373 = sbr.rel (%p370) target = $region12
      $region11: #{_lif_forward_sequence_impl.1} parent=5 // pred_region
        %s374 = ssub.s32 %s27, 1
        // Predicated region
        $region13: #{_lif_forward_sequence_impl.1} parent=11 // pred_check
          %p375 = pneg %p134
        $region14: #{_lif_forward_sequence_impl.1} parent=11 // pred_check_branch
          %377 = sbr.rel (%p375) target = $region16
        $region15: #{_lif_forward_sequence_impl.1} parent=11 // pred_region
          %s379 = ssub.s32 128, 128
          %380 = vsyncadd [#allocation7], %s379
          %s381 = smul.addr %s37, 2
          %s382 = sadd.s32 %s38, %s381
          %s383 = smul.addr %s382, 128
          %s384 = scalar_lea.hbm %s2, %s383
          %s386 = sshll.u32 [#allocation6], 4
          %s387 = int_to_ptr.vmem [resolvable:$true] %s386
          %389 = dma.hbm_to_vmem [thread:$0]  %s384, 128, %s387, [#allocation7]
        $region16: #{_lif_forward_sequence_impl.1} parent=11 // pred_fallthru
          _
        // Predicated region
        $region17: #{_lif_forward_sequence_impl.1} parent=11 // pred_check
          %p390 = pneg %p162
        $region18: #{_lif_forward_sequence_impl.1} parent=11 // pred_check_branch
          %392 = sbr.rel (%p390) target = $region20
        $region19: #{_lif_forward_sequence_impl.1} parent=11 // pred_region
          %s394 = ssub.s32 128, 128
          %395 = vsyncadd [#allocation7], %s394
          %s396 = smul.addr %s37, 2
          %s397 = sadd.s32 %s38, %s396
          %s398 = smul.addr %s397, 128
          %s399 = scalar_lea.hbm %s3, %s398
          %s401 = sshll.u32 [#allocation8], 4
          %s402 = int_to_ptr.vmem [resolvable:$true] %s401
          %404 = dma.hbm_to_vmem [thread:$0]  %s399, 128, %s402, [#allocation7]
        $region20: #{_lif_forward_sequence_impl.1} parent=11 // pred_fallthru
          _
        // Predicated region
        $region21: #{_lif_forward_sequence_impl.1} parent=11 // pred_check
          %p405 = pneg %p190
        $region22: #{_lif_forward_sequence_impl.1} parent=11 // pred_check_branch
          %407 = sbr.rel (%p405) target = $region24
        $region23: #{_lif_forward_sequence_impl.1} parent=11 // pred_region
          %s409 = ssub.s32 128, 128
          %410 = vsyncadd [#allocation10], %s409
          %s411 = smul.addr %s37, 2
          %s412 = sadd.s32 %s38, %s411
          %s413 = smul.addr %s412, 128
          %s414 = scalar_lea.hbm %s4, %s413
          %s416 = sshll.u32 [#allocation9], 4
          %s417 = int_to_ptr.vmem [resolvable:$true] %s416
          %419 = dma.hbm_to_vmem [thread:$0]  %s414, 128, %s417, [#allocation10]
        $region24: #{_lif_forward_sequence_impl.1} parent=11 // pred_fallthru
          _
        // Predicated region
        $region25: #{_lif_forward_sequence_impl.1} parent=11 // pred_check
          %p420 = pneg %p218
        $region26: #{_lif_forward_sequence_impl.1} parent=11 // pred_check_branch
          %422 = sbr.rel (%p420) target = $region28
        $region27: #{_lif_forward_sequence_impl.1} parent=11 // pred_region
          %s424 = ssub.s32 128, 128
          %425 = vsyncadd [#allocation10], %s424
          %s426 = smul.addr %s37, 2
          %s427 = sadd.s32 %s38, %s426
          %s428 = smul.addr %s427, 128
          %s429 = scalar_lea.hbm %s5, %s428
          %s431 = sshll.u32 [#allocation11], 4
          %s432 = int_to_ptr.vmem [resolvable:$true] %s431
          %434 = dma.hbm_to_vmem [thread:$0]  %s429, 128, %s432, [#allocation10]
        $region28: #{_lif_forward_sequence_impl.1} parent=11 // pred_fallthru
          _
      $region12: #{_lif_forward_sequence_impl.1} parent=5 // pred_fallthru
        _
      %p435 = scmp.lt.s32.totalorder %s27, 2
      // Predicated region
      $region29: #{_lif_forward_sequence_impl.1} parent=5 // pred_check
        %p436 = pneg %p435
      $region30: #{_lif_forward_sequence_impl.1} parent=5 // pred_check_branch
        %438 = sbr.rel (%p436) target = $region32
      $region31: #{_lif_forward_sequence_impl.1} parent=5 // pred_region
        // Predicated region
        $region33: #{_lif_forward_sequence_impl.1} parent=31 // pred_check
          %p439 = pneg %p70
        $region34: #{_lif_forward_sequence_impl.1} parent=31 // pred_check_branch
          %441 = sbr.rel (%p439) target = $region36
        $region35: #{_lif_forward_sequence_impl.1} parent=31 // pred_region
          %s442 = sand.u32 %s60, 1
          %s443 = sand.u32 %s60, 1
          %s444 = smul.addr %s443, 64
          %s445 = scalar_lea.vmem [#allocation2], %s444
          %s446 = smul.u32 8, %s36
          %s447 = smul.addr %s34, 2
          %s448 = sadd.s32 %s35, %s447
          %s449 = smul.addr %s446, 2
          %s450 = sadd.s32 %s448, %s449
          %s451 = smul.addr %s450, 8
          %s452 = scalar_lea.vmem %s0, %s451
          // Predicated region
          $region37: #{_lif_forward_sequence_impl.1} parent=35 // pred_check
            _
          $region38: #{_lif_forward_sequence_impl.1} parent=35 // pred_check_branch
            %454 = sbr.rel (0) target = $region40
          $region39: #{_lif_forward_sequence_impl.1} parent=35 // pred_region
            // Predicated region
            $region41: #{_lif_forward_sequence_impl.1} parent=39 // pred_check
              _
            $region42: #{_lif_forward_sequence_impl.1} parent=39 // pred_check_branch
              %456 = sbr.rel (0) target = $region44
            $region43: #{_lif_forward_sequence_impl.1} parent=39 // pred_region
              // Predicated region
              $region56: #{_lif_forward_sequence_impl.1} parent=43 // pred_check
                _
              $region57: #{_lif_forward_sequence_impl.1} parent=43 // pred_check_branch
                %486 = sbr.rel (0) target = $region59
              $region58: #{_lif_forward_sequence_impl.1} parent=43 // pred_region
                loop: start=0, step=1, limit=1
                $region60: #{_lif_forward_sequence_impl.1} parent=58 // loop_pre_header
                  _
                $region61: #{_lif_forward_sequence_impl.1} parent=58 // loop_header
                  %s488 = sphi 0, %s492
                  %p489 = scmp.ge.s32.totalorder %s488, 1
                  %s493 = sphi %s452, %s452
                  %s494 = sphi %s445, %s445
                $region62: #{_lif_forward_sequence_impl.1} parent=58 // loop_header_branch
                  %491 = sbr.rel (%p489) target = $region66
                $region63: #{_lif_forward_sequence_impl.1} parent=58 // loop_body
                  %v495 = vld [vmem:[%s493] sm:$0xff]
                  %496 = vst [vmem:[%s494] sm:$0xff] %v495
                  %v497 = vld [vmem:[%s493 + $0x10] sm:$0xff]
                  %498 = vst [vmem:[%s494 + $0x8] sm:$0xff] %v497
                  %v499 = vld [vmem:[%s493 + $0x20] sm:$0xff]
                  %500 = vst [vmem:[%s494 + $0x10] sm:$0xff] %v499
                  %v501 = vld [vmem:[%s493 + $0x30] sm:$0xff]
                  %502 = vst [vmem:[%s494 + $0x18] sm:$0xff] %v501
                  %v503 = vld [vmem:[%s493 + $0x40] sm:$0xff]
                  %504 = vst [vmem:[%s494 + $0x20] sm:$0xff] %v503
                  %v505 = vld [vmem:[%s493 + $0x50] sm:$0xff]
                  %506 = vst [vmem:[%s494 + $0x28] sm:$0xff] %v505
                  %v507 = vld [vmem:[%s493 + $0x60] sm:$0xff]
                  %508 = vst [vmem:[%s494 + $0x30] sm:$0xff] %v507
                  %v509 = vld [vmem:[%s493 + $0x70] sm:$0xff]
                  %510 = vst [vmem:[%s494 + $0x38] sm:$0xff] %v509
                $region64: #{_lif_forward_sequence_impl.1} parent=58 // loop_footer
                  %s492 = sadd.s32 1, %s488
                $region65: #{_lif_forward_sequence_impl.1} parent=58 // loop_footer_branch
                  %487 = sbr.rel target = $region61
                $region66: #{_lif_forward_sequence_impl.1} parent=58 // loop_exit
                  _
              $region59: #{_lif_forward_sequence_impl.1} parent=43 // pred_fallthru
                _
              // Predicated region
              $region67: #{_lif_forward_sequence_impl.1} parent=43 // pred_check
                _
              $region68: #{_lif_forward_sequence_impl.1} parent=43 // pred_check_branch
                %512 = sbr.rel target = $region70
              $region69: #{_lif_forward_sequence_impl.1} parent=43 // pred_region
                _
              $region70: #{_lif_forward_sequence_impl.1} parent=43 // pred_fallthru
                _
            $region44: #{_lif_forward_sequence_impl.1} parent=39 // pred_fallthru
              _
            // Predicated region
            $region45: #{_lif_forward_sequence_impl.1} parent=39 // pred_check
              _
            $region46: #{_lif_forward_sequence_impl.1} parent=39 // pred_check_branch
              %458 = sbr.rel target = $region48
            $region47: #{_lif_forward_sequence_impl.1} parent=39 // pred_region
              %s460 = ssub.s32 256, 1
              loop: start=0, step=1, limit=1
              $region49: #{_lif_forward_sequence_impl.1} parent=47 // loop_pre_header
                _
              $region50: #{_lif_forward_sequence_impl.1} parent=47 // loop_header
                %s462 = sphi 0, %s466
                %p463 = scmp.ge.s32.totalorder %s462, 1
                %s467 = sphi %s452, %s452
                %s468 = sphi %s445, %s445
              $region51: #{_lif_forward_sequence_impl.1} parent=47 // loop_header_branch
                %465 = sbr.rel (%p463) target = $region55
              $region52: #{_lif_forward_sequence_impl.1} parent=47 // loop_body
                %v469 = vld [vmem:[%s467] sm:%s460]
                %470 = vst [vmem:[%s468] sm:%s460] %v469
                %v471 = vld [vmem:[%s467 + $0x10] sm:%s460]
                %472 = vst [vmem:[%s468 + $0x8] sm:%s460] %v471
                %v473 = vld [vmem:[%s467 + $0x20] sm:%s460]
                %474 = vst [vmem:[%s468 + $0x10] sm:%s460] %v473
                %v475 = vld [vmem:[%s467 + $0x30] sm:%s460]
                %476 = vst [vmem:[%s468 + $0x18] sm:%s460] %v475
                %v477 = vld [vmem:[%s467 + $0x40] sm:%s460]
                %478 = vst [vmem:[%s468 + $0x20] sm:%s460] %v477
                %v479 = vld [vmem:[%s467 + $0x50] sm:%s460]
                %480 = vst [vmem:[%s468 + $0x28] sm:%s460] %v479
                %v481 = vld [vmem:[%s467 + $0x60] sm:%s460]
                %482 = vst [vmem:[%s468 + $0x30] sm:%s460] %v481
                %v483 = vld [vmem:[%s467 + $0x70] sm:%s460]
                %484 = vst [vmem:[%s468 + $0x38] sm:%s460] %v483
              $region53: #{_lif_forward_sequence_impl.1} parent=47 // loop_footer
                %s466 = sadd.s32 1, %s462
              $region54: #{_lif_forward_sequence_impl.1} parent=47 // loop_footer_branch
                %461 = sbr.rel target = $region50
              $region55: #{_lif_forward_sequence_impl.1} parent=47 // loop_exit
                _
            $region48: #{_lif_forward_sequence_impl.1} parent=39 // pred_fallthru
              _
          $region40: #{_lif_forward_sequence_impl.1} parent=35 // pred_fallthru
            _
          %513 = vnop
        $region36: #{_lif_forward_sequence_impl.1} parent=31 // pred_fallthru
          _
        // Predicated region
        $region71: #{_lif_forward_sequence_impl.1} parent=31 // pred_check
          %p514 = pneg %p100
        $region72: #{_lif_forward_sequence_impl.1} parent=31 // pred_check_branch
          %516 = sbr.rel (%p514) target = $region74
        $region73: #{_lif_forward_sequence_impl.1} parent=31 // pred_region
          %s517 = sand.u32 %s90, 1
          %s518 = scalar_lea.sflag [#allocation4], %s517
          %s519 = sand.u32 %s90, 1
          %s520 = smul.addr %s519, 64
          %s521 = scalar_lea.vmem [#allocation3], %s520
          %s522 = smul.u32 8, %s36
          %s524 = ssub.s32 1024, 1024
          %525 = vsyncadd %s518, %s524
          %s526 = smul.addr %s34, 2
          %s527 = sadd.s32 %s35, %s526
          %s528 = smul.addr %s522, 2
          %s529 = sadd.s32 %s527, %s528
          %s530 = smul.addr %s529, 128
          %s531 = scalar_lea.hbm %s1, %s530
          %s532 = sshll.u32 %s521, 4
          %s533 = int_to_ptr.vmem [resolvable:$true] %s532
          %538 = dma.hbm_to_vmem [thread:$0]  %s531, 1024, %s533, %s518, 256, 128, 8
        $region74: #{_lif_forward_sequence_impl.1} parent=31 // pred_fallthru
          _
      $region32: #{_lif_forward_sequence_impl.1} parent=5 // pred_fallthru
        _
      %p539 = scmp.le.s32.totalorder 1, %s27
      %p540 = scmp.lt.s32.totalorder %s27, 3
      %p541 = pnand %p539, %p540
      %p542 = pneg %p541
      // Predicated region
      $region75: #{_lif_forward_sequence_impl.1} parent=5 // pred_check
        _
      $region76: #{_lif_forward_sequence_impl.1} parent=5 // pred_check_branch
        %544 = sbr.rel (%p541) target = $region78
      $region77: #{_lif_forward_sequence_impl.1} parent=5 // pred_region
        %s545 = ssub.s32 %s27, 1
        %s546 = sand.u32 %s63, 1
        %s547 = sand.u32 %s63, 1
        %s548 = smul.addr %s547, 64
        %s549 = scalar_lea.vmem [#allocation2], %s548
        // Predicated region
        $region79: #{_lif_forward_sequence_impl.1} parent=77 // pred_check
          %p550 = pneg %p76
        $region80: #{_lif_forward_sequence_impl.1} parent=77 // pred_check_branch
          %552 = sbr.rel (%p550) target = $region82
        $region81: #{_lif_forward_sequence_impl.1} parent=77 // pred_region
          _
        $region82: #{_lif_forward_sequence_impl.1} parent=77 // pred_fallthru
          _
        %s553 = sand.u32 %s93, 1
        %s554 = scalar_lea.sflag [#allocation4], %s553
        %s555 = sand.u32 %s93, 1
        %s556 = smul.addr %s555, 64
        %s557 = scalar_lea.vmem [#allocation3], %s556
        // Predicated region
        $region83: #{_lif_forward_sequence_impl.1} parent=77 // pred_check
          %p558 = pneg %p106
        $region84: #{_lif_forward_sequence_impl.1} parent=77 // pred_check_branch
          %560 = sbr.rel (%p558) target = $region86
        $region85: #{_lif_forward_sequence_impl.1} parent=77 // pred_region
          %561 = dma.done %s554, 1024
        $region86: #{_lif_forward_sequence_impl.1} parent=77 // pred_fallthru
          _
        // Predicated region
        $region87: #{_lif_forward_sequence_impl.1} parent=77 // pred_check
          %p562 = pneg %p134
        $region88: #{_lif_forward_sequence_impl.1} parent=77 // pred_check_branch
          %564 = sbr.rel (%p562) target = $region90
        $region89: #{_lif_forward_sequence_impl.1} parent=77 // pred_region
          %565 = dma.done [#allocation7], 128
        $region90: #{_lif_forward_sequence_impl.1} parent=77 // pred_fallthru
          _
        // Predicated region
        $region91: #{_lif_forward_sequence_impl.1} parent=77 // pred_check
          %p566 = pneg %p162
        $region92: #{_lif_forward_sequence_impl.1} parent=77 // pred_check_branch
          %568 = sbr.rel (%p566) target = $region94
        $region93: #{_lif_forward_sequence_impl.1} parent=77 // pred_region
          %569 = dma.done [#allocation7], 128
        $region94: #{_lif_forward_sequence_impl.1} parent=77 // pred_fallthru
          _
        // Predicated region
        $region95: #{_lif_forward_sequence_impl.1} parent=77 // pred_check
          %p570 = pneg %p190
        $region96: #{_lif_forward_sequence_impl.1} parent=77 // pred_check_branch
          %572 = sbr.rel (%p570) target = $region98
        $region97: #{_lif_forward_sequence_impl.1} parent=77 // pred_region
          %573 = dma.done [#allocation10], 128
        $region98: #{_lif_forward_sequence_impl.1} parent=77 // pred_fallthru
          _
        // Predicated region
        $region99: #{_lif_forward_sequence_impl.1} parent=77 // pred_check
          %p574 = pneg %p218
        $region100: #{_lif_forward_sequence_impl.1} parent=77 // pred_check_branch
          %576 = sbr.rel (%p574) target = $region102
        $region101: #{_lif_forward_sequence_impl.1} parent=77 // pred_region
          %577 = dma.done [#allocation10], 128
        $region102: #{_lif_forward_sequence_impl.1} parent=77 // pred_fallthru
          _
        %s578 = sand.u32 %s63, 1
        %s579 = sand.u32 %s63, 1
        %s580 = smul.addr %s579, 64
        %s581 = scalar_lea.vmem [#allocation2], %s580
        %p582 = pneg %p76
        %p583 = pneg %p73
        %s584 = sand.u32 %s93, 1
        %s585 = scalar_lea.sflag [#allocation4], %s584
        %s586 = sand.u32 %s93, 1
        %s587 = smul.addr %s586, 64
        %s588 = scalar_lea.vmem [#allocation3], %s587
        %p589 = pneg %p106
        %p590 = pneg %p103
        %p591 = pneg %p134
        %p592 = pneg %p131
        %p593 = pneg %p162
        %p594 = pneg %p159
        %p595 = pneg %p190
        %p596 = pneg %p187
        %p597 = pneg %p218
        %p598 = pneg %p215
        %p599 = pneg %p248
        %p600 = pneg %p245
        %s601 = sand.u32 %s235, 1
        %s602 = scalar_lea.sflag [#allocation5], %s601
        %s603 = sand.u32 %s235, 1
        %s604 = smul.addr %s603, 16
        %s605 = scalar_lea.vmem [#allocation12], %s604
        %p606 = pneg %p276
        %p607 = pneg %p273
        %p608 = pneg %p304
        %p609 = pneg %p301
        %p610 = pneg %p332
        %p611 = pneg %p329
        %p612 = pneg %p360
        %p613 = pneg %p357
        %s614 = smul.u32 8, %s39
        %s615 = smul.u32 8, %s39
        %s616 = smul.u32 8, %s39
        %p619 = scmp.eq.s32.totalorder %s39, 0
        // Predicated region
        $region103: #{_lif_forward_sequence_impl.1} parent=77 // pred_check
          %p620 = pneg %p619
        $region104: #{_lif_forward_sequence_impl.1} parent=77 // pred_check_branch
          %622 = sbr.rel (%p620) target = $region106
        $region105: #{_lif_forward_sequence_impl.1} parent=77 // pred_region
          %v623 = vld [vmem:[#allocation6] sm:$0xff]
          %624 = vst [vmem:[#allocation13] sm:$0xff] %v623
          %v625 = vld [vmem:[#allocation9] sm:$0xff]
          %626 = vst [vmem:[#allocation16] sm:$0xff] %v625
          %v627 = vld [vmem:[#allocation11] sm:$0xff]
          %628 = vst [vmem:[#allocation18] sm:$0xff] %v627
          %v629 = vld [vmem:[#allocation8] sm:$0xff]
          %630 = vst [vmem:[#allocation15] sm:$0xff] %v629
        $region106: #{_lif_forward_sequence_impl.1} parent=77 // pred_fallthru
          _
        %v631 = vld [vmem:[#allocation15] sm:$0xff]
        %v632 = vmax.f32 %v631, 0.5
        %v633 = vmin.f32 %v632, 2.0
        %v634 = vld [vmem:[#allocation13] sm:$0xff]
        %v635 = vld [vmem:[#allocation16] sm:$0xff]
        %v636 = vld [vmem:[#allocation18] sm:$0xff]
        %v637 = vld [vmem:[%s549] sm:$0xff]
        %v638 = vld [vmem:[%s557] sm:$0xff]
        %v639 = vxor.u32 %v638, 2147483648
        %v640 = vmul.f32 %v639, 1.442695
        %v641 = vpow.pop %v640
        %v642 = vadd.f32 %v641, 1.0
        %v643 = vrcp.pop %v642
        %v644 = vmul.f32 1.0, %v643
        %v645 = vmul.f32 %v637, %v636
        %v646 = vadd.f32 %v645, %v644
        %v647 = vsub.f32 %v646, %v635
        %v648 = vsub.f32 %v647, %v634
        %v649 = vmul.f32 %v648, 0.05
        %v650 = vadd.f32 %v634, %v649
        %v651 = vsub.f32 %v650, %v631
        %vm652 = vcmp.gt.f32.partialorder %v651, 0.0
        %v653 = vsel %vm652, 1, 0
        %v654 = vcvt.s32.f32 %v653
        %v655 = vsel %vm652, 0.0, %v650
        %v656 = vmul.f32 %v635, 0.9
        %v657 = vmul.f32 %v654, 0.5
        %v658 = vadd.f32 %v656, %v657
        %v659 = vmul.f32 %v654, 0.1
        %v660 = vsub.f32 1.0, %v659
        %v661 = vmul.f32 %v636, %v660
        %v662 = vsub.f32 1.0, %v636
        %v663 = vmul.f32 %v662, 0.05
        %v664 = vadd.f32 %v661, %v663
        %vm665 = vmpackc.low %vm652, %vm652
        %vm666 = vmpackc.even %vm665, %vm665
        %v667 = vsel %vm666, 16843009, 0
        %668 = vst [vmem:[%s605] sm:$0x3] %v667
        %s669 = scalar_lea.vmem %s549, 8 [#allocation2]
        %v670 = vld [vmem:[%s669] sm:$0xff]
        %s671 = scalar_lea.vmem %s557, 8 [#allocation3]
        %v672 = vld [vmem:[%s671] sm:$0xff]
        %v673 = vxor.u32 %v672, 2147483648
        %v674 = vmul.f32 %v673, 1.442695
        %v675 = vpow.pop %v674
        %v676 = vadd.f32 %v675, 1.0
        %v677 = vrcp.pop %v676
        %v678 = vmul.f32 1.0, %v677
        %v679 = vmul.f32 %v670, %v664
        %v680 = vadd.f32 %v679, %v678
        %v681 = vsub.f32 %v680, %v658
        %v682 = vsub.f32 %v681, %v655
        %v683 = vmul.f32 %v682, 0.05
        %v684 = vadd.f32 %v655, %v683
        %v685 = vsub.f32 %v684, %v633
        %vm686 = vcmp.gt.f32.partialorder %v685, 0.0
        %v687 = vsel %vm686, 1, 0
        %v688 = vcvt.s32.f32 %v687
        %v689 = vsel %vm686, 0.0, %v684
        %v690 = vmul.f32 %v658, 0.9
        %v691 = vmul.f32 %v688, 0.5
        %v692 = vadd.f32 %v690, %v691
        %v693 = vmul.f32 %v688, 0.1
        %v694 = vsub.f32 1.0, %v693
        %v695 = vmul.f32 %v664, %v694
        %v696 = vsub.f32 1.0, %v664
        %v697 = vmul.f32 %v696, 0.05
        %v698 = vadd.f32 %v695, %v697
        %vm699 = vmpackc.low %vm686, %vm686
        %vm700 = vmpackc.even %vm699, %vm699
        %v701 = vsel %vm700, 16843009, 0
        %s702 = scalar_lea.vmem %s605, 2 [#allocation12]
        %703 = vst [vmem:[%s702] sm:$0x3] %v701
        %s704 = scalar_lea.vmem %s549, 16 [#allocation2]
        %v705 = vld [vmem:[%s704] sm:$0xff]
        %s706 = scalar_lea.vmem %s557, 16 [#allocation3]
        %v707 = vld [vmem:[%s706] sm:$0xff]
        %v708 = vxor.u32 %v707, 2147483648
        %v709 = vmul.f32 %v708, 1.442695
        %v710 = vpow.pop %v709
        %v711 = vadd.f32 %v710, 1.0
        %v712 = vrcp.pop %v711
        %v713 = vmul.f32 1.0, %v712
        %v714 = vmul.f32 %v705, %v698
        %v715 = vadd.f32 %v714, %v713
        %v716 = vsub.f32 %v715, %v692
        %v717 = vsub.f32 %v716, %v689
        %v718 = vmul.f32 %v717, 0.05
        %v719 = vadd.f32 %v689, %v718
        %v720 = vsub.f32 %v719, %v633
        %vm721 = vcmp.gt.f32.partialorder %v720, 0.0
        %v722 = vsel %vm721, 1, 0
        %v723 = vcvt.s32.f32 %v722
        %v724 = vsel %vm721, 0.0, %v719
        %v725 = vmul.f32 %v692, 0.9
        %v726 = vmul.f32 %v723, 0.5
        %v727 = vadd.f32 %v725, %v726
        %v728 = vmul.f32 %v723, 0.1
        %v729 = vsub.f32 1.0, %v728
        %v730 = vmul.f32 %v698, %v729
        %v731 = vsub.f32 1.0, %v698
        %v732 = vmul.f32 %v731, 0.05
        %v733 = vadd.f32 %v730, %v732
        %vm734 = vmpackc.low %vm721, %vm721
        %vm735 = vmpackc.even %vm734, %vm734
        %v736 = vsel %vm735, 16843009, 0
        %s737 = scalar_lea.vmem %s605, 4 [#allocation12]
        %738 = vst [vmem:[%s737] sm:$0x3] %v736
        %s739 = scalar_lea.vmem %s549, 24 [#allocation2]
        %v740 = vld [vmem:[%s739] sm:$0xff]
        %s741 = scalar_lea.vmem %s557, 24 [#allocation3]
        %v742 = vld [vmem:[%s741] sm:$0xff]
        %v743 = vxor.u32 %v742, 2147483648
        %v744 = vmul.f32 %v743, 1.442695
        %v745 = vpow.pop %v744
        %v746 = vadd.f32 %v745, 1.0
        %v747 = vrcp.pop %v746
        %v748 = vmul.f32 1.0, %v747
        %v749 = vmul.f32 %v740, %v733
        %v750 = vadd.f32 %v749, %v748
        %v751 = vsub.f32 %v750, %v727
        %v752 = vsub.f32 %v751, %v724
        %v753 = vmul.f32 %v752, 0.05
        %v754 = vadd.f32 %v724, %v753
        %v755 = vsub.f32 %v754, %v633
        %vm756 = vcmp.gt.f32.partialorder %v755, 0.0
        %v757 = vsel %vm756, 1, 0
        %v758 = vcvt.s32.f32 %v757
        %v759 = vsel %vm756, 0.0, %v754
        %v760 = vmul.f32 %v727, 0.9
        %v761 = vmul.f32 %v758, 0.5
        %v762 = vadd.f32 %v760, %v761
        %v763 = vmul.f32 %v758, 0.1
        %v764 = vsub.f32 1.0, %v763
        %v765 = vmul.f32 %v733, %v764
        %v766 = vsub.f32 1.0, %v733
        %v767 = vmul.f32 %v766, 0.05
        %v768 = vadd.f32 %v765, %v767
        %vm769 = vmpackc.low %vm756, %vm756
        %vm770 = vmpackc.even %vm769, %vm769
        %v771 = vsel %vm770, 16843009, 0
        %s772 = scalar_lea.vmem %s605, 6 [#allocation12]
        %773 = vst [vmem:[%s772] sm:$0x3] %v771
        %s774 = scalar_lea.vmem %s549, 32 [#allocation2]
        %v775 = vld [vmem:[%s774] sm:$0xff]
        %s776 = scalar_lea.vmem %s557, 32 [#allocation3]
        %v777 = vld [vmem:[%s776] sm:$0xff]
        %v778 = vxor.u32 %v777, 2147483648
        %v779 = vmul.f32 %v778, 1.442695
        %v780 = vpow.pop %v779
        %v781 = vadd.f32 %v780, 1.0
        %v782 = vrcp.pop %v781
        %v783 = vmul.f32 1.0, %v782
        %v784 = vmul.f32 %v775, %v768
        %v785 = vadd.f32 %v784, %v783
        %v786 = vsub.f32 %v785, %v762
        %v787 = vsub.f32 %v786, %v759
        %v788 = vmul.f32 %v787, 0.05
        %v789 = vadd.f32 %v759, %v788
        %v790 = vsub.f32 %v789, %v633
        %vm791 = vcmp.gt.f32.partialorder %v790, 0.0
        %v792 = vsel %vm791, 1, 0
        %v793 = vcvt.s32.f32 %v792
        %v794 = vsel %vm791, 0.0, %v789
        %v795 = vmul.f32 %v762, 0.9
        %v796 = vmul.f32 %v793, 0.5
        %v797 = vadd.f32 %v795, %v796
        %v798 = vmul.f32 %v793, 0.1
        %v799 = vsub.f32 1.0, %v798
        %v800 = vmul.f32 %v768, %v799
        %v801 = vsub.f32 1.0, %v768
        %v802 = vmul.f32 %v801, 0.05
        %v803 = vadd.f32 %v800, %v802
        %vm804 = vmpackc.low %vm791, %vm791
        %vm805 = vmpackc.even %vm804, %vm804
        %v806 = vsel %vm805, 16843009, 0
        %s807 = scalar_lea.vmem %s605, 8 [#allocation12]
        %808 = vst [vmem:[%s807] sm:$0x3] %v806
        %s809 = scalar_lea.vmem %s549, 40 [#allocation2]
        %v810 = vld [vmem:[%s809] sm:$0xff]
        %s811 = scalar_lea.vmem %s557, 40 [#allocation3]
        %v812 = vld [vmem:[%s811] sm:$0xff]
        %v813 = vxor.u32 %v812, 2147483648
        %v814 = vmul.f32 %v813, 1.442695
        %v815 = vpow.pop %v814
        %v816 = vadd.f32 %v815, 1.0
        %v817 = vrcp.pop %v816
        %v818 = vmul.f32 1.0, %v817
        %v819 = vmul.f32 %v810, %v803
        %v820 = vadd.f32 %v819, %v818
        %v821 = vsub.f32 %v820, %v797
        %v822 = vsub.f32 %v821, %v794
        %v823 = vmul.f32 %v822, 0.05
        %v824 = vadd.f32 %v794, %v823
        %v825 = vsub.f32 %v824, %v633
        %vm826 = vcmp.gt.f32.partialorder %v825, 0.0
        %v827 = vsel %vm826, 1, 0
        %v828 = vcvt.s32.f32 %v827
        %v829 = vsel %vm826, 0.0, %v824
        %v830 = vmul.f32 %v797, 0.9
        %v831 = vmul.f32 %v828, 0.5
        %v832 = vadd.f32 %v830, %v831
        %v833 = vmul.f32 %v828, 0.1
        %v834 = vsub.f32 1.0, %v833
        %v835 = vmul.f32 %v803, %v834
        %v836 = vsub.f32 1.0, %v803
        %v837 = vmul.f32 %v836, 0.05
        %v838 = vadd.f32 %v835, %v837
        %vm839 = vmpackc.low %vm826, %vm826
        %vm840 = vmpackc.even %vm839, %vm839
        %v841 = vsel %vm840, 16843009, 0
        %s842 = scalar_lea.vmem %s605, 10 [#allocation12]
        %843 = vst [vmem:[%s842] sm:$0x3] %v841
        %s844 = scalar_lea.vmem %s549, 48 [#allocation2]
        %v845 = vld [vmem:[%s844] sm:$0xff]
        %s846 = scalar_lea.vmem %s557, 48 [#allocation3]
        %v847 = vld [vmem:[%s846] sm:$0xff]
        %v848 = vxor.u32 %v847, 2147483648
        %v849 = vmul.f32 %v848, 1.442695
        %v850 = vpow.pop %v849
        %v851 = vadd.f32 %v850, 1.0
        %v852 = vrcp.pop %v851
        %v853 = vmul.f32 1.0, %v852
        %v854 = vmul.f32 %v845, %v838
        %v855 = vadd.f32 %v854, %v853
        %v856 = vsub.f32 %v855, %v832
        %v857 = vsub.f32 %v856, %v829
        %v858 = vmul.f32 %v857, 0.05
        %v859 = vadd.f32 %v829, %v858
        %v860 = vsub.f32 %v859, %v633
        %vm861 = vcmp.gt.f32.partialorder %v860, 0.0
        %v862 = vsel %vm861, 1, 0
        %v863 = vcvt.s32.f32 %v862
        %v864 = vsel %vm861, 0.0, %v859
        %v865 = vmul.f32 %v832, 0.9
        %v866 = vmul.f32 %v863, 0.5
        %v867 = vadd.f32 %v865, %v866
        %v868 = vmul.f32 %v863, 0.1
        %v869 = vsub.f32 1.0, %v868
        %v870 = vmul.f32 %v838, %v869
        %v871 = vsub.f32 1.0, %v838
        %v872 = vmul.f32 %v871, 0.05
        %v873 = vadd.f32 %v870, %v872
        %vm874 = vmpackc.low %vm861, %vm861
        %vm875 = vmpackc.even %vm874, %vm874
        %v876 = vsel %vm875, 16843009, 0
        %s877 = scalar_lea.vmem %s605, 12 [#allocation12]
        %878 = vst [vmem:[%s877] sm:$0x3] %v876
        %s879 = scalar_lea.vmem %s549, 56 [#allocation2]
        %v880 = vld [vmem:[%s879] sm:$0xff]
        %s881 = scalar_lea.vmem %s557, 56 [#allocation3]
        %v882 = vld [vmem:[%s881] sm:$0xff]
        %v883 = vxor.u32 %v882, 2147483648
        %v884 = vmul.f32 %v883, 1.442695
        %v885 = vpow.pop %v884
        %v886 = vadd.f32 %v885, 1.0
        %v887 = vrcp.pop %v886
        %v888 = vmul.f32 1.0, %v887
        %v889 = vmul.f32 %v880, %v873
        %v890 = vadd.f32 %v889, %v888
        %v891 = vsub.f32 %v890, %v867
        %v892 = vsub.f32 %v891, %v864
        %v893 = vmul.f32 %v892, 0.05
        %v894 = vadd.f32 %v864, %v893
        %v895 = vsub.f32 %v894, %v633
        %vm896 = vcmp.gt.f32.partialorder %v895, 0.0
        %v897 = vsel %vm896, 1, 0
        %v898 = vcvt.s32.f32 %v897
        %v899 = vsel %vm896, 0.0, %v894
        %v900 = vmul.f32 %v867, 0.9
        %v901 = vmul.f32 %v898, 0.5
        %v902 = vadd.f32 %v900, %v901
        %v903 = vmul.f32 %v898, 0.1
        %v904 = vsub.f32 1.0, %v903
        %v905 = vmul.f32 %v873, %v904
        %v906 = vsub.f32 1.0, %v873
        %v907 = vmul.f32 %v906, 0.05
        %v908 = vadd.f32 %v905, %v907
        %vm909 = vmpackc.low %vm896, %vm896
        %vm910 = vmpackc.even %vm909, %vm909
        %v911 = vsel %vm910, 16843009, 0
        %s912 = scalar_lea.vmem %s605, 14 [#allocation12]
        %913 = vst [vmem:[%s912] sm:$0x3] %v911
        %914 = vst [vmem:[#allocation13] sm:$0xff] %v899
        %915 = vst [vmem:[#allocation16] sm:$0xff] %v902
        %916 = vst [vmem:[#allocation18] sm:$0xff] %v908
        // Predicated region
        $region107: #{_lif_forward_sequence_impl.1} parent=77 // pred_check
          %p917 = pneg %p619
        $region108: #{_lif_forward_sequence_impl.1} parent=77 // pred_check_branch
          %919 = sbr.rel (%p917) target = $region110
        $region109: #{_lif_forward_sequence_impl.1} parent=77 // pred_region
          %920 = vst [vmem:[#allocation15] sm:$0xff] %v633
        $region110: #{_lif_forward_sequence_impl.1} parent=77 // pred_fallthru
          _
        %s921 = sand.u32 %s235, 1
        %s922 = scalar_lea.sflag [#allocation5], %s921
        %s923 = sand.u32 %s235, 1
        %s924 = smul.addr %s923, 16
        %s925 = scalar_lea.vmem [#allocation12], %s924
        // Predicated region
        $region111: #{_lif_forward_sequence_impl.1} parent=77 // pred_check
          %p926 = pneg %p245
        $region112: #{_lif_forward_sequence_impl.1} parent=77 // pred_check_branch
          %928 = sbr.rel (%p926) target = $region114
        $region113: #{_lif_forward_sequence_impl.1} parent=77 // pred_region
          %s929 = smul.u32 8, %s39
          %s931 = ssub.s32 256, 256
          %932 = vsyncadd %s922, %s931
          %s933 = smul.addr %s37, 2
          %s934 = sadd.s32 %s38, %s933
          %s935 = smul.addr %s929, 2
          %s936 = sadd.s32 %s934, %s935
          %s937 = smul.addr %s936, 32
          %s938 = scalar_lea.hbm %s6, %s937
          %s939 = sshll.u32 %s925, 4
          %s940 = int_to_ptr.vmem [resolvable:$true] %s939
          %945 = dma.vmem_to_hbm [thread:$0]  %s940, 256, %s938, %s922, 32, 64, 2
        $region114: #{_lif_forward_sequence_impl.1} parent=77 // pred_fallthru
          _
        // Predicated region
        $region115: #{_lif_forward_sequence_impl.1} parent=77 // pred_check
          %p946 = pneg %p273
        $region116: #{_lif_forward_sequence_impl.1} parent=77 // pred_check_branch
          %948 = sbr.rel (%p946) target = $region118
        $region117: #{_lif_forward_sequence_impl.1} parent=77 // pred_region
          %s950 = ssub.s32 128, 128
          %951 = vsyncadd [#allocation14], %s950
          %s952 = smul.addr %s37, 2
          %s953 = sadd.s32 %s38, %s952
          %s954 = smul.addr %s953, 128
          %s955 = scalar_lea.hbm %s7, %s954
          %s957 = sshll.u32 [#allocation13], 4
          %s958 = int_to_ptr.vmem [resolvable:$true] %s957
          %960 = dma.vmem_to_hbm [thread:$0]  %s958, 128, %s955, [#allocation14]
        $region118: #{_lif_forward_sequence_impl.1} parent=77 // pred_fallthru
          _
        // Predicated region
        $region119: #{_lif_forward_sequence_impl.1} parent=77 // pred_check
          %p961 = pneg %p301
        $region120: #{_lif_forward_sequence_impl.1} parent=77 // pred_check_branch
          %963 = sbr.rel (%p961) target = $region122
        $region121: #{_lif_forward_sequence_impl.1} parent=77 // pred_region
          %s965 = ssub.s32 128, 128
          %966 = vsyncadd [#allocation14], %s965
          %s967 = smul.addr %s37, 2
          %s968 = sadd.s32 %s38, %s967
          %s969 = smul.addr %s968, 128
          %s970 = scalar_lea.hbm %s8, %s969
          %s972 = sshll.u32 [#allocation15], 4
          %s973 = int_to_ptr.vmem [resolvable:$true] %s972
          %975 = dma.vmem_to_hbm [thread:$0]  %s973, 128, %s970, [#allocation14]
        $region122: #{_lif_forward_sequence_impl.1} parent=77 // pred_fallthru
          _
        // Predicated region
        $region123: #{_lif_forward_sequence_impl.1} parent=77 // pred_check
          %p976 = pneg %p329
        $region124: #{_lif_forward_sequence_impl.1} parent=77 // pred_check_branch
          %978 = sbr.rel (%p976) target = $region126
        $region125: #{_lif_forward_sequence_impl.1} parent=77 // pred_region
          %s980 = ssub.s32 128, 128
          %981 = vsyncadd [#allocation17], %s980
          %s982 = smul.addr %s37, 2
          %s983 = sadd.s32 %s38, %s982
          %s984 = smul.addr %s983, 128
          %s985 = scalar_lea.hbm %s9, %s984
          %s987 = sshll.u32 [#allocation16], 4
          %s988 = int_to_ptr.vmem [resolvable:$true] %s987
          %990 = dma.vmem_to_hbm [thread:$0]  %s988, 128, %s985, [#allocation17]
        $region126: #{_lif_forward_sequence_impl.1} parent=77 // pred_fallthru
          _
        // Predicated region
        $region127: #{_lif_forward_sequence_impl.1} parent=77 // pred_check
          %p991 = pneg %p357
        $region128: #{_lif_forward_sequence_impl.1} parent=77 // pred_check_branch
          %993 = sbr.rel (%p991) target = $region130
        $region129: #{_lif_forward_sequence_impl.1} parent=77 // pred_region
          %s995 = ssub.s32 128, 128
          %996 = vsyncadd [#allocation17], %s995
          %s997 = smul.addr %s37, 2
          %s998 = sadd.s32 %s38, %s997
          %s999 = smul.addr %s998, 128
          %s1000 = scalar_lea.hbm %s10, %s999
          %s1002 = sshll.u32 [#allocation18], 4
          %s1003 = int_to_ptr.vmem [resolvable:$true] %s1002
          %1005 = dma.vmem_to_hbm [thread:$0]  %s1003, 128, %s1000, [#allocation17]
        $region130: #{_lif_forward_sequence_impl.1} parent=77 // pred_fallthru
          _
        // Predicated region
        $region131: #{_lif_forward_sequence_impl.1} parent=77 // pred_check
          %p1006 = pneg %p273
        $region132: #{_lif_forward_sequence_impl.1} parent=77 // pred_check_branch
          %1008 = sbr.rel (%p1006) target = $region134
        $region133: #{_lif_forward_sequence_impl.1} parent=77 // pred_region
          %1009 = dma.done [#allocation14], 128
        $region134: #{_lif_forward_sequence_impl.1} parent=77 // pred_fallthru
          _
        // Predicated region
        $region135: #{_lif_forward_sequence_impl.1} parent=77 // pred_check
          %p1010 = pneg %p301
        $region136: #{_lif_forward_sequence_impl.1} parent=77 // pred_check_branch
          %1012 = sbr.rel (%p1010) target = $region138
        $region137: #{_lif_forward_sequence_impl.1} parent=77 // pred_region
          %1013 = dma.done [#allocation14], 128
        $region138: #{_lif_forward_sequence_impl.1} parent=77 // pred_fallthru
          _
        // Predicated region
        $region139: #{_lif_forward_sequence_impl.1} parent=77 // pred_check
          %p1014 = pneg %p329
        $region140: #{_lif_forward_sequence_impl.1} parent=77 // pred_check_branch
          %1016 = sbr.rel (%p1014) target = $region142
        $region141: #{_lif_forward_sequence_impl.1} parent=77 // pred_region
          %1017 = dma.done [#allocation17], 128
        $region142: #{_lif_forward_sequence_impl.1} parent=77 // pred_fallthru
          _
        // Predicated region
        $region143: #{_lif_forward_sequence_impl.1} parent=77 // pred_check
          %p1018 = pneg %p357
        $region144: #{_lif_forward_sequence_impl.1} parent=77 // pred_check_branch
          %1020 = sbr.rel (%p1018) target = $region146
        $region145: #{_lif_forward_sequence_impl.1} parent=77 // pred_region
          %1021 = dma.done [#allocation17], 128
        $region146: #{_lif_forward_sequence_impl.1} parent=77 // pred_fallthru
          _
      $region78: #{_lif_forward_sequence_impl.1} parent=5 // pred_fallthru
        _
      %p1022 = scmp.le.s32.totalorder 2, %s27
      // Predicated region
      $region147: #{_lif_forward_sequence_impl.1} parent=5 // pred_check
        %p1023 = pneg %p1022
      $region148: #{_lif_forward_sequence_impl.1} parent=5 // pred_check_branch
        %1025 = sbr.rel (%p1023) target = $region150
      $region149: #{_lif_forward_sequence_impl.1} parent=5 // pred_region
        %s1026 = ssub.s32 %s27, 2
        // Predicated region
        $region151: #{_lif_forward_sequence_impl.1} parent=149 // pred_check
          %p1027 = pneg %p251
        $region152: #{_lif_forward_sequence_impl.1} parent=149 // pred_check_branch
          %1029 = sbr.rel (%p1027) target = $region154
        $region153: #{_lif_forward_sequence_impl.1} parent=149 // pred_region
          %s1030 = sand.u32 %s236, 1
          %s1031 = scalar_lea.sflag [#allocation5], %s1030
          %s1032 = sand.u32 %s236, 1
          %s1033 = smul.addr %s1032, 16
          %s1034 = scalar_lea.vmem [#allocation12], %s1033
          %1035 = dma.done %s1031, 256
        $region154: #{_lif_forward_sequence_impl.1} parent=149 // pred_fallthru
          _
      $region150: #{_lif_forward_sequence_impl.1} parent=5 // pred_fallthru
        _
    $region6: #{_lif_forward_sequence_impl.1} parent=1 // loop_footer
      %s31 = sadd.s32 1, %s27
    $region7: #{_lif_forward_sequence_impl.1} parent=1 // loop_footer_branch
      %26 = sbr.rel target = $region3
    $region8: #{_lif_forward_sequence_impl.1} parent=1 // loop_exit
      _
    %1036 = vsyncpa [#allocation4], 1
    %s1037 = scalar_lea.sflag [#allocation4], 1
    %1038 = vsyncpa %s1037, 1
    %1039 = vsyncpa [#allocation7], 1
    %1040 = vsyncpa [#allocation10], 1
    %1041 = vsyncpa [#allocation5], 1
    %s1042 = scalar_lea.sflag [#allocation5], 1
    %1043 = vsyncpa %s1042, 1
    %1044 = vsyncpa [#allocation14], 1
    %1045 = vsyncpa [#allocation17], 1

</llo_original>
